<compile_context>
chip_gen: v6e
topology: v6e:2x2x1
jax: 0.10.0
libtpu: 0.0.40
codegen_flags: <defaults>
</compile_context>

<pallas_src>
import jax
import jax.numpy as jnp
from jax.experimental import pallas as pl
from jax.experimental.pallas import tpu as pltpu

_LANE = 128
_VMEM_SPEC = pl.BlockSpec(memory_space=pltpu.MemorySpace.VMEM)


def _round_up(n, m):
    return ((n + m - 1) // m) * m


# ---------------------------------------------------------------------------
# Fused Pallas kernel (all blocks + final linear)
# ---------------------------------------------------------------------------
def _make_tcn_kernel(block_meta, *, k, T, B, compute_dtype):
    """block_meta: tuple of (dilation, has_downsample) per TemporalBlock."""
    rows = T * B

    def kernel(*refs):
        # refs = x, per-block params..., lin_w, lin_b, o_ref, acc_ref(scratch)
        it = iter(refs)
        x_ref = next(it)
        block_refs = []
        for _, has_ds in block_meta:
            n = 6 if has_ds else 4
            block_refs.append(tuple(next(it) for _ in range(n)))
        lw_ref = next(it)
        lb_ref = next(it)
        o_ref = next(it)
        acc_ref = next(it)

        def causal_conv(h, w_ref, b_ref, d):
            """h: (rows, Cpad) f32 value; w_ref: (k, Cpad, Cpad); b_ref: (1, Cpad)."""
            hc = h.astype(compute_dtype)
            bias = b_ref[...].astype(jnp.float32)
            # Tap k-1 has zero temporal shift: initialize the accumulator with
            # bias + one full-slab MXU matmul (single unmasked store).
            acc_ref[...] = bias + jnp.dot(
                hc, w_ref[k - 1].astype(compute_dtype),
                preferred_element_type=jnp.float32)
            # Earlier taps: matmul only the valid rows, accumulate into the
            # row window shifted by `shift_timesteps * B` (causal zero padding
            # of the first `shift` timesteps falls out for free).
            for j in range(k - 1):
                sr = (k - 1 - j) * d * B  # tap shift, in rows (= timesteps * B)
                if sr >= rows:
                    continue
                part = jnp.dot(hc[: rows - sr],
                               w_ref[j].astype(compute_dtype),
                               preferred_element_type=jnp.float32)
                acc_ref[pl.ds(sr, rows - sr), :] += part
            return acc_ref[...]

        h = x_ref[...].astype(jnp.float32)  # (rows, Cpad), VMEM-resident value
        for (d, has_ds), brefs in zip(block_meta, block_refs):
            if has_ds:
                w1, b1, w2, b2, wd, bd = brefs
            else:
                w1, b1, w2, b2 = brefs
            h1 = jnp.maximum(causal_conv(h, w1, b1, d), 0.0)
            # TODO(synk): dropout1/dropout2 are identity (eval mode).
            h2 = jnp.maximum(causal_conv(h1, w2, b2, d), 0.0)
            if has_ds:
                res = jnp.dot(h.astype(compute_dtype),
                              wd[...].astype(compute_dtype),
                              preferred_element_type=jnp.float32
                              ) + bd[...].astype(jnp.float32)
            else:
                res = h
            h = jnp.maximum(h2 + res, 0.0)

        # Final Linear applied to the last timestep only (last B rows).
        y_last = h[(T - 1) * B:]  # (B, Cpad)
        out = jnp.dot(y_last.astype(compute_dtype),
                      lw_ref[...].astype(compute_dtype),
                      preferred_element_type=jnp.float32
                      ) + lb_ref[...].astype(jnp.float32)
        o_ref[...] = out.astype(o_ref.dtype)

    return kernel


# ---------------------------------------------------------------------------
# Wrapper (layout plumbing: flatten T*B, pad channels to 128 lanes)
# ---------------------------------------------------------------------------
def tcn_forward(x_btc, params, *, kernel_size, compute_dtype=jnp.float32):
    """x_btc: (B, T, input_size) — same layout PyTorch TCN.forward receives."""
    B, T, in_ch = x_btc.shape
    blocks = params["blocks"]
    lw, lb = params["linear_w"], params["linear_b"]
    out_size = lw.shape[1]

    chan_dims = [in_ch] + [blk["w1"].shape[-1] for blk in blocks]
    cpad = _round_up(max(chan_dims), _LANE)
    opad = _round_up(out_size, _LANE)

    # (B,T,C) -> (T*B, Cpad): row = t*B + b, so a shift of s timesteps is a
    # shift of s*B rows; channels zero-padded to a full lane multiple.
    x_flat = jnp.transpose(x_btc, (1, 0, 2)).reshape(T * B, in_ch)
    x_pad = jnp.pad(x_flat, ((0, 0), (0, cpad - in_ch)))

    def pad_bias(a):
        return jnp.pad(a, ((0, 0), (0, cpad - a.shape[1])))

    operands = [x_pad]
    block_meta = []
    for i, blk in enumerate(blocks):
        has_ds = blk["has_downsample"]
        block_meta.append((2 ** i, has_ds))
        w1 = jnp.pad(blk["w1"], ((0, 0), (0, cpad - blk["w1"].shape[1]),
                                 (0, cpad - blk["w1"].shape[2])))
        w2 = jnp.pad(blk["w2"], ((0, 0), (0, cpad - blk["w2"].shape[1]),
                                 (0, cpad - blk["w2"].shape[2])))
        operands += [w1, pad_bias(blk["b1"]), w2, pad_bias(blk["b2"])]
        if has_ds:
            wd = jnp.pad(blk["wd"], ((0, cpad - blk["wd"].shape[0]),
                                     (0, cpad - blk["wd"].shape[1])))
            operands += [wd, pad_bias(blk["bd"])]
    lw_pad = jnp.pad(lw, ((0, cpad - lw.shape[0]), (0, opad - lw.shape[1])))
    lb_pad = jnp.pad(lb, ((0, 0), (0, opad - lb.shape[1])))
    operands += [lw_pad, lb_pad]

    kernel = _make_tcn_kernel(tuple(block_meta), k=kernel_size, T=T, B=B,
                              compute_dtype=compute_dtype)
    out_pad = pl.pallas_call(
        kernel,
        out_shape=jax.ShapeDtypeStruct((B, opad), x_btc.dtype),
        in_specs=[_VMEM_SPEC] * len(operands),
        out_specs=_VMEM_SPEC,
        scratch_shapes=[pltpu.VMEM((T * B, cpad), jnp.float32)],
    )(*operands)
    return out_pad[:, :out_size]  # (B, output_size)


# ---------------------------------------------------------------------------
# Pure-JAX reference (correctness check only)
# ---------------------------------------------------------------------------
def ref_forward(x_btc, params, kernel_size):
    def conv(h, w, b, d):  # h: (B, T, C); w: (k, Cin, Cout); b: (1, Cout)
        k = w.shape[0]
        Bb, T, _ = h.shape
        acc = jnp.zeros((Bb, T, w.shape[-1]), jnp.float32)
        for j in range(k):
            s = (k - 1 - j) * d
            hp = jnp.pad(h, ((0, 0), (s, 0), (0, 0)))[:, :T, :]
            acc = acc + jnp.einsum("btc,co->bto", hp, w[j])
        return acc + b[None]

    h = x_btc.astype(jnp.float32)
    for i, blk in enumerate(params["blocks"]):
        d = 2 ** i
        h1 = jax.nn.relu(conv(h, blk["w1"], blk["b1"], d))
        h2 = jax.nn.relu(conv(h1, blk["w2"], blk["b2"], d))
        if blk["has_downsample"]:
            res = jnp.einsum("btc,co->bto", h, blk["wd"]) + blk["bd"][None]
        else:
            res = h
        h = jax.nn.relu(h2 + res)
    return h[:, -1, :] @ params["linear_w"] + params["linear_b"][0]


# ---------------------------------------------------------------------------
# Main
# ---------------------------------------------------------------------------
if __name__ == "__main__":
    B, T = 2, 16
    input_size, output_size = 4, 3
    num_channels = [8, 16]
    kernel_size = 2
    dropout = 0.2  # identity in this inference-mode implementation

    key = jax.random.PRNGKey(0)
    keys = iter(jax.random.split(key, 64))

    blocks = []
    c_in = input_size
    for c_out in num_channels:
        has_ds = c_in != c_out
        blk = dict(
            w1=0.01 * jax.random.normal(next(keys), (kernel_size, c_in, c_out), jnp.float32),
            b1=0.01 * jax.random.normal(next(keys), (1, c_out), jnp.float32),
            w2=0.01 * jax.random.normal(next(keys), (kernel_size, c_out, c_out), jnp.float32),
            b2=0.01 * jax.random.normal(next(keys), (1, c_out), jnp.float32),
            has_downsample=has_ds,
        )
        if has_ds:
            blk["wd"] = 0.01 * jax.random.normal(next(keys), (c_in, c_out), jnp.float32)
            blk["bd"] = 0.01 * jax.random.normal(next(keys), (1, c_out), jnp.float32)
        blocks.append(blk)
        c_in = c_out

    params = dict(
        blocks=blocks,
        linear_w=0.1 * jax.random.normal(next(keys), (num_channels[-1], output_size), jnp.float32),
        linear_b=0.01 * jax.random.normal(next(keys), (1, output_size), jnp.float32),
    )

    x = jax.random.normal(next(keys), (B, T, input_size), jnp.float32)

    out = tcn_forward(x, params, kernel_size=kernel_size)
    out = jax.block_until_ready(out)

    ref = ref_forward(x, params, kernel_size)
    assert out.shape == (B, output_size), out.shape
    assert jnp.allclose(out, ref, atol=1e-5, rtol=1e-5), (out, ref)

    print("KERNEL_OK")
</pallas_src>

<mosaic_0001>
module attributes {stable_mosaic.version = 11 : i64} {
  func.func @kernel(%arg0: memref<32x128xf32, #tpu.memory_space<vmem>>, %arg1: memref<2x128x128xf32, #tpu.memory_space<vmem>>, %arg2: memref<1x128xf32, #tpu.memory_space<vmem>>, %arg3: memref<2x128x128xf32, #tpu.memory_space<vmem>>, %arg4: memref<1x128xf32, #tpu.memory_space<vmem>>, %arg5: memref<128x128xf32, #tpu.memory_space<vmem>>, %arg6: memref<1x128xf32, #tpu.memory_space<vmem>>, %arg7: memref<2x128x128xf32, #tpu.memory_space<vmem>>, %arg8: memref<1x128xf32, #tpu.memory_space<vmem>>, %arg9: memref<2x128x128xf32, #tpu.memory_space<vmem>>, %arg10: memref<1x128xf32, #tpu.memory_space<vmem>>, %arg11: memref<128x128xf32, #tpu.memory_space<vmem>>, %arg12: memref<1x128xf32, #tpu.memory_space<vmem>>, %arg13: memref<128x128xf32, #tpu.memory_space<vmem>>, %arg14: memref<1x128xf32, #tpu.memory_space<vmem>>, %arg15: memref<2x128xf32, #tpu.memory_space<vmem>>, %arg16: memref<32x128xf32, #tpu.memory_space<vmem>>) attributes {dimension_semantics = [], scalar_prefetch = 0 : i64, scratch_operands = 1 : i64, tpu.core_type = #tpu.core_type<tc>} {
    %c0 = arith.constant 0 : index
    %c0_0 = arith.constant 0 : index
    %0 = vector.load %arg0[%c0, %c0_0] : memref<32x128xf32, #tpu.memory_space<vmem>>, vector<32x128xf32>
    %c0_1 = arith.constant 0 : index
    %c0_2 = arith.constant 0 : index
    %1 = vector.load %arg2[%c0_1, %c0_2] : memref<1x128xf32, #tpu.memory_space<vmem>>, vector<1x128xf32>
    %c1 = arith.constant 1 : index
    %c0_3 = arith.constant 0 : index
    %c0_4 = arith.constant 0 : index
    %2 = vector.load %arg1[%c1, %c0_3, %c0_4] : memref<2x128x128xf32, #tpu.memory_space<vmem>>, vector<1x128x128xf32>
    %3 = vector.shape_cast %2 : vector<1x128x128xf32> to vector<128x128xf32>
    %cst = arith.constant dense<0.000000e+00> : vector<32x128xf32>
    %4 = tpu.matmul %0, %3, %cst {dimension_numbers = #tpu.dot_dimension_numbers<[1], [0], [0], [1], [0, 0, 1, 1], [], []>} : vector<32x128xf32>, vector<128x128xf32>, vector<32x128xf32> -> vector<32x128xf32>
    %5 = vector.broadcast %1 : vector<1x128xf32> to vector<32x128xf32>
    %6 = arith.addf %5, %4 : vector<32x128xf32>
    %c0_5 = arith.constant 0 : index
    %c0_6 = arith.constant 0 : index
    %7 = vector.load %arg16[%c0_5, %c0_6] : memref<32x128xf32, #tpu.memory_space<vmem>>, vector<32x128xf32>
    tpu.vector_store %arg16[%c0_5, %c0_6], %6 {strides = array<i32>} : memref<32x128xf32, #tpu.memory_space<vmem>>, vector<32x128xf32>,
    %8 = vector.extract_strided_slice %0 {offsets = [0, 0], sizes = [30, 128], strides = [1, 1]} : vector<32x128xf32> to vector<30x128xf32>
    %c0_7 = arith.constant 0 : index
    %c0_8 = arith.constant 0 : index
    %c0_9 = arith.constant 0 : index
    %9 = vector.load %arg1[%c0_7, %c0_8, %c0_9] : memref<2x128x128xf32, #tpu.memory_space<vmem>>, vector<1x128x128xf32>
    %10 = vector.shape_cast %9 : vector<1x128x128xf32> to vector<128x128xf32>
    %cst_10 = arith.constant dense<0.000000e+00> : vector<30x128xf32>
    %11 = tpu.matmul %8, %10, %cst_10 {dimension_numbers = #tpu.dot_dimension_numbers<[1], [0], [0], [1], [0, 0, 1, 1], [], []>} : vector<30x128xf32>, vector<128x128xf32>, vector<30x128xf32> -> vector<30x128xf32>
    %c2 = arith.constant 2 : index
    %c0_11 = arith.constant 0 : index
    %12 = vector.load %arg16[%c2, %c0_11] : memref<32x128xf32, #tpu.memory_space<vmem>>, vector<30x128xf32>
    %13 = arith.addf %12, %11 : vector<30x128xf32>
    %c2_12 = arith.constant 2 : index
    %c0_13 = arith.constant 0 : index
    %14 = vector.load %arg16[%c2_12, %c0_13] : memref<32x128xf32, #tpu.memory_space<vmem>>, vector<30x128xf32>
    tpu.vector_store %arg16[%c2_12, %c0_13], %13 {strides = array<i32>} : memref<32x128xf32, #tpu.memory_space<vmem>>, vector<30x128xf32>,
    %c0_14 = arith.constant 0 : index
    %c0_15 = arith.constant 0 : index
    %15 = vector.load %arg16[%c0_14, %c0_15] : memref<32x128xf32, #tpu.memory_space<vmem>>, vector<32x128xf32>
    %cst_16 = arith.constant 0.000000e+00 : f32
    %16 = vector.broadcast %cst_16 : f32 to vector<32x128xf32>
    %17 = arith.maximumf %15, %16 : vector<32x128xf32>
    %c0_17 = arith.constant 0 : index
    %c0_18 = arith.constant 0 : index
    %18 = vector.load %arg4[%c0_17, %c0_18] : memref<1x128xf32, #tpu.memory_space<vmem>>, vector<1x128xf32>
    %c1_19 = arith.constant 1 : index
    %c0_20 = arith.constant 0 : index
    %c0_21 = arith.constant 0 : index
    %19 = vector.load %arg3[%c1_19, %c0_20, %c0_21] : memref<2x128x128xf32, #tpu.memory_space<vmem>>, vector<1x128x128xf32>
    %20 = vector.shape_cast %19 : vector<1x128x128xf32> to vector<128x128xf32>
    %cst_22 = arith.constant dense<0.000000e+00> : vector<32x128xf32>
    %21 = tpu.matmul %17, %20, %cst_22 {dimension_numbers = #tpu.dot_dimension_numbers<[1], [0], [0], [1], [0, 0, 1, 1], [], []>} : vector<32x128xf32>, vector<128x128xf32>, vector<32x128xf32> -> vector<32x128xf32>
    %22 = vector.broadcast %18 : vector<1x128xf32> to vector<32x128xf32>
    %23 = arith.addf %22, %21 : vector<32x128xf32>
    %c0_23 = arith.constant 0 : index
    %c0_24 = arith.constant 0 : index
    %24 = vector.load %arg16[%c0_23, %c0_24] : memref<32x128xf32, #tpu.memory_space<vmem>>, vector<32x128xf32>
    tpu.vector_store %arg16[%c0_23, %c0_24], %23 {strides = array<i32>} : memref<32x128xf32, #tpu.memory_space<vmem>>, vector<32x128xf32>,
    %25 = vector.extract_strided_slice %17 {offsets = [0, 0], sizes = [30, 128], strides = [1, 1]} : vector<32x128xf32> to vector<30x128xf32>
    %c0_25 = arith.constant 0 : index
    %c0_26 = arith.constant 0 : index
    %c0_27 = arith.constant 0 : index
    %26 = vector.load %arg3[%c0_25, %c0_26, %c0_27] : memref<2x128x128xf32, #tpu.memory_space<vmem>>, vector<1x128x128xf32>
    %27 = vector.shape_cast %26 : vector<1x128x128xf32> to vector<128x128xf32>
    %cst_28 = arith.constant dense<0.000000e+00> : vector<30x128xf32>
    %28 = tpu.matmul %25, %27, %cst_28 {dimension_numbers = #tpu.dot_dimension_numbers<[1], [0], [0], [1], [0, 0, 1, 1], [], []>} : vector<30x128xf32>, vector<128x128xf32>, vector<30x128xf32> -> vector<30x128xf32>
    %c2_29 = arith.constant 2 : index
    %c0_30 = arith.constant 0 : index
    %29 = vector.load %arg16[%c2_29, %c0_30] : memref<32x128xf32, #tpu.memory_space<vmem>>, vector<30x128xf32>
    %30 = arith.addf %29, %28 : vector<30x128xf32>
    %c2_31 = arith.constant 2 : index
    %c0_32 = arith.constant 0 : index
    %31 = vector.load %arg16[%c2_31, %c0_32] : memref<32x128xf32, #tpu.memory_space<vmem>>, vector<30x128xf32>
    tpu.vector_store %arg16[%c2_31, %c0_32], %30 {strides = array<i32>} : memref<32x128xf32, #tpu.memory_space<vmem>>, vector<30x128xf32>,
    %c0_33 = arith.constant 0 : index
    %c0_34 = arith.constant 0 : index
    %32 = vector.load %arg16[%c0_33, %c0_34] : memref<32x128xf32, #tpu.memory_space<vmem>>, vector<32x128xf32>
    %cst_35 = arith.constant 0.000000e+00 : f32
    %33 = vector.broadcast %cst_35 : f32 to vector<32x128xf32>
    %34 = arith.maximumf %32, %33 : vector<32x128xf32>
    %c0_36 = arith.constant 0 : index
    %c0_37 = arith.constant 0 : index
    %35 = vector.load %arg5[%c0_36, %c0_37] : memref<128x128xf32, #tpu.memory_space<vmem>>, vector<128x128xf32>
    %cst_38 = arith.constant dense<0.000000e+00> : vector<32x128xf32>
    %36 = tpu.matmul %0, %35, %cst_38 {dimension_numbers = #tpu.dot_dimension_numbers<[1], [0], [0], [1], [0, 0, 1, 1], [], []>} : vector<32x128xf32>, vector<128x128xf32>, vector<32x128xf32> -> vector<32x128xf32>
    %c0_39 = arith.constant 0 : index
    %c0_40 = arith.constant 0 : index
    %37 = vector.load %arg6[%c0_39, %c0_40] : memref<1x128xf32, #tpu.memory_space<vmem>>, vector<1x128xf32>
    %38 = vector.broadcast %37 : vector<1x128xf32> to vector<32x128xf32>
    %39 = arith.addf %36, %38 : vector<32x128xf32>
    %40 = arith.addf %34, %39 : vector<32x128xf32>
    %cst_41 = arith.constant 0.000000e+00 : f32
    %41 = vector.broadcast %cst_41 : f32 to vector<32x128xf32>
    %42 = arith.maximumf %40, %41 : vector<32x128xf32>
    %c0_42 = arith.constant 0 : index
    %c0_43 = arith.constant 0 : index
    %43 = vector.load %arg8[%c0_42, %c0_43] : memref<1x128xf32, #tpu.memory_space<vmem>>, vector<1x128xf32>
    %c1_44 = arith.constant 1 : index
    %c0_45 = arith.constant 0 : index
    %c0_46 = arith.constant 0 : index
    %44 = vector.load %arg7[%c1_44, %c0_45, %c0_46] : memref<2x128x128xf32, #tpu.memory_space<vmem>>, vector<1x128x128xf32>
    %45 = vector.shape_cast %44 : vector<1x128x128xf32> to vector<128x128xf32>
    %cst_47 = arith.constant dense<0.000000e+00> : vector<32x128xf32>
    %46 = tpu.matmul %42, %45, %cst_47 {dimension_numbers = #tpu.dot_dimension_numbers<[1], [0], [0], [1], [0, 0, 1, 1], [], []>} : vector<32x128xf32>, vector<128x128xf32>, vector<32x128xf32> -> vector<32x128xf32>
    %47 = vector.broadcast %43 : vector<1x128xf32> to vector<32x128xf32>
    %48 = arith.addf %47, %46 : vector<32x128xf32>
    %c0_48 = arith.constant 0 : index
    %c0_49 = arith.constant 0 : index
    %49 = vector.load %arg16[%c0_48, %c0_49] : memref<32x128xf32, #tpu.memory_space<vmem>>, vector<32x128xf32>
    tpu.vector_store %arg16[%c0_48, %c0_49], %48 {strides = array<i32>} : memref<32x128xf32, #tpu.memory_space<vmem>>, vector<32x128xf32>,
    %50 = vector.extract_strided_slice %42 {offsets = [0, 0], sizes = [28, 128], strides = [1, 1]} : vector<32x128xf32> to vector<28x128xf32>
    %c0_50 = arith.constant 0 : index
    %c0_51 = arith.constant 0 : index
    %c0_52 = arith.constant 0 : index
    %51 = vector.load %arg7[%c0_50, %c0_51, %c0_52] : memref<2x128x128xf32, #tpu.memory_space<vmem>>, vector<1x128x128xf32>
    %52 = vector.shape_cast %51 : vector<1x128x128xf32> to vector<128x128xf32>
    %cst_53 = arith.constant dense<0.000000e+00> : vector<28x128xf32>
    %53 = tpu.matmul %50, %52, %cst_53 {dimension_numbers = #tpu.dot_dimension_numbers<[1], [0], [0], [1], [0, 0, 1, 1], [], []>} : vector<28x128xf32>, vector<128x128xf32>, vector<28x128xf32> -> vector<28x128xf32>
    %c4 = arith.constant 4 : index
    %c0_54 = arith.constant 0 : index
    %54 = vector.load %arg16[%c4, %c0_54] : memref<32x128xf32, #tpu.memory_space<vmem>>, vector<28x128xf32>
    %55 = arith.addf %54, %53 : vector<28x128xf32>
    %c4_55 = arith.constant 4 : index
    %c0_56 = arith.constant 0 : index
    %56 = vector.load %arg16[%c4_55, %c0_56] : memref<32x128xf32, #tpu.memory_space<vmem>>, vector<28x128xf32>
    tpu.vector_store %arg16[%c4_55, %c0_56], %55 {strides = array<i32>} : memref<32x128xf32, #tpu.memory_space<vmem>>, vector<28x128xf32>,
    %c0_57 = arith.constant 0 : index
    %c0_58 = arith.constant 0 : index
    %57 = vector.load %arg16[%c0_57, %c0_58] : memref<32x128xf32, #tpu.memory_space<vmem>>, vector<32x128xf32>
    %cst_59 = arith.constant 0.000000e+00 : f32
    %58 = vector.broadcast %cst_59 : f32 to vector<32x128xf32>
    %59 = arith.maximumf %57, %58 : vector<32x128xf32>
    %c0_60 = arith.constant 0 : index
    %c0_61 = arith.constant 0 : index
    %60 = vector.load %arg10[%c0_60, %c0_61] : memref<1x128xf32, #tpu.memory_space<vmem>>, vector<1x128xf32>
    %c1_62 = arith.constant 1 : index
    %c0_63 = arith.constant 0 : index
    %c0_64 = arith.constant 0 : index
    %61 = vector.load %arg9[%c1_62, %c0_63, %c0_64] : memref<2x128x128xf32, #tpu.memory_space<vmem>>, vector<1x128x128xf32>
    %62 = vector.shape_cast %61 : vector<1x128x128xf32> to vector<128x128xf32>
    %cst_65 = arith.constant dense<0.000000e+00> : vector<32x128xf32>
    %63 = tpu.matmul %59, %62, %cst_65 {dimension_numbers = #tpu.dot_dimension_numbers<[1], [0], [0], [1], [0, 0, 1, 1], [], []>} : vector<32x128xf32>, vector<128x128xf32>, vector<32x128xf32> -> vector<32x128xf32>
    %64 = vector.broadcast %60 : vector<1x128xf32> to vector<32x128xf32>
    %65 = arith.addf %64, %63 : vector<32x128xf32>
    %c0_66 = arith.constant 0 : index
    %c0_67 = arith.constant 0 : index
    %66 = vector.load %arg16[%c0_66, %c0_67] : memref<32x128xf32, #tpu.memory_space<vmem>>, vector<32x128xf32>
    tpu.vector_store %arg16[%c0_66, %c0_67], %65 {strides = array<i32>} : memref<32x128xf32, #tpu.memory_space<vmem>>, vector<32x128xf32>,
    %67 = vector.extract_strided_slice %59 {offsets = [0, 0], sizes = [28, 128], strides = [1, 1]} : vector<32x128xf32> to vector<28x128xf32>
    %c0_68 = arith.constant 0 : index
    %c0_69 = arith.constant 0 : index
    %c0_70 = arith.constant 0 : index
    %68 = vector.load %arg9[%c0_68, %c0_69, %c0_70] : memref<2x128x128xf32, #tpu.memory_space<vmem>>, vector<1x128x128xf32>
    %69 = vector.shape_cast %68 : vector<1x128x128xf32> to vector<128x128xf32>
    %cst_71 = arith.constant dense<0.000000e+00> : vector<28x128xf32>
    %70 = tpu.matmul %67, %69, %cst_71 {dimension_numbers = #tpu.dot_dimension_numbers<[1], [0], [0], [1], [0, 0, 1, 1], [], []>} : vector<28x128xf32>, vector<128x128xf32>, vector<28x128xf32> -> vector<28x128xf32>
    %c4_72 = arith.constant 4 : index
    %c0_73 = arith.constant 0 : index
    %71 = vector.load %arg16[%c4_72, %c0_73] : memref<32x128xf32, #tpu.memory_space<vmem>>, vector<28x128xf32>
    %72 = arith.addf %71, %70 : vector<28x128xf32>
    %c4_74 = arith.constant 4 : index
    %c0_75 = arith.constant 0 : index
    %73 = vector.load %arg16[%c4_74, %c0_75] : memref<32x128xf32, #tpu.memory_space<vmem>>, vector<28x128xf32>
    tpu.vector_store %arg16[%c4_74, %c0_75], %72 {strides = array<i32>} : memref<32x128xf32, #tpu.memory_space<vmem>>, vector<28x128xf32>,
    %c0_76 = arith.constant 0 : index
    %c0_77 = arith.constant 0 : index
    %74 = vector.load %arg16[%c0_76, %c0_77] : memref<32x128xf32, #tpu.memory_space<vmem>>, vector<32x128xf32>
    %cst_78 = arith.constant 0.000000e+00 : f32
    %75 = vector.broadcast %cst_78 : f32 to vector<32x128xf32>
    %76 = arith.maximumf %74, %75 : vector<32x128xf32>
    %c0_79 = arith.constant 0 : index
    %c0_80 = arith.constant 0 : index
    %77 = vector.load %arg11[%c0_79, %c0_80] : memref<128x128xf32, #tpu.memory_space<vmem>>, vector<128x128xf32>
    %cst_81 = arith.constant dense<0.000000e+00> : vector<32x128xf32>
    %78 = tpu.matmul %42, %77, %cst_81 {dimension_numbers = #tpu.dot_dimension_numbers<[1], [0], [0], [1], [0, 0, 1, 1], [], []>} : vector<32x128xf32>, vector<128x128xf32>, vector<32x128xf32> -> vector<32x128xf32>
    %c0_82 = arith.constant 0 : index
    %c0_83 = arith.constant 0 : index
    %79 = vector.load %arg12[%c0_82, %c0_83] : memref<1x128xf32, #tpu.memory_space<vmem>>, vector<1x128xf32>
    %80 = vector.broadcast %79 : vector<1x128xf32> to vector<32x128xf32>
    %81 = arith.addf %78, %80 : vector<32x128xf32>
    %82 = arith.addf %76, %81 : vector<32x128xf32>
    %cst_84 = arith.constant 0.000000e+00 : f32
    %83 = vector.broadcast %cst_84 : f32 to vector<32x128xf32>
    %84 = arith.maximumf %82, %83 : vector<32x128xf32>
    %85 = vector.extract_strided_slice %84 {offsets = [30, 0], sizes = [2, 128], strides = [1, 1]} : vector<32x128xf32> to vector<2x128xf32>
    %c0_85 = arith.constant 0 : index
    %c0_86 = arith.constant 0 : index
    %86 = vector.load %arg13[%c0_85, %c0_86] : memref<128x128xf32, #tpu.memory_space<vmem>>, vector<128x128xf32>
    %cst_87 = arith.constant dense<0.000000e+00> : vector<2x128xf32>
    %87 = tpu.matmul %85, %86, %cst_87 {dimension_numbers = #tpu.dot_dimension_numbers<[1], [0], [0], [1], [0, 0, 1, 1], [], []>} : vector<2x128xf32>, vector<128x128xf32>, vector<2x128xf32> -> vector<2x128xf32>
    %c0_88 = arith.constant 0 : index
    %c0_89 = arith.constant 0 : index
    %88 = vector.load %arg14[%c0_88, %c0_89] : memref<1x128xf32, #tpu.memory_space<vmem>>, vector<1x128xf32>
    %89 = vector.broadcast %88 : vector<1x128xf32> to vector<2x128xf32>
    %90 = arith.addf %87, %89 : vector<2x128xf32>
    %c0_90 = arith.constant 0 : index
    %c0_91 = arith.constant 0 : index
    %91 = vector.load %arg15[%c0_90, %c0_91] : memref<2x128xf32, #tpu.memory_space<vmem>>, vector<2x128xf32>
    tpu.vector_store %arg15[%c0_90, %c0_91], %90 {strides = array<i32>} : memref<2x128xf32, #tpu.memory_space<vmem>>, vector<2x128xf32>,
    return
  }
}

</mosaic_0001>

<llo_original>
// kernel: tpu_custom_call.1
$region0: #{tpu_custom_call.1}
  #allocation0 [shape = 'u32[]', space=smem, size = 0x4, offset = 0x4, fixed_abs, tag = 'smem constant byte address 0x4 - core index']
  #allocation1 [shape = 'u32[144,128]{1,0:T(1,128)}', space=vmem, size = 0x12000, scoped, tag = 'internal scratch']
  #allocation2 [shape = 'f32[32,128]{1,0:T(8,128)}', space=vmem, size = 0x4000, scoped, tag = 'scratch operand']
  %s0 = inlined_call_operand.hbm [shape: f32[32,128], index: 0, kind: input, shape index: {}]
  %s1 = inlined_call_operand.hbm [shape: f32[2,128,128], index: 1, kind: input, shape index: {}]
  %s2 = inlined_call_operand.vmem [shape: f32[1,128], index: 2, kind: input, shape index: {}]
  %s3 = inlined_call_operand.hbm [shape: f32[2,128,128], index: 3, kind: input, shape index: {}]
  %s4 = inlined_call_operand.vmem [shape: f32[1,128], index: 4, kind: input, shape index: {}]
  %s5 = inlined_call_operand.hbm [shape: f32[128,128], index: 5, kind: input, shape index: {}]
  %s6 = inlined_call_operand.vmem [shape: f32[1,128], index: 6, kind: input, shape index: {}]
  %s7 = inlined_call_operand.hbm [shape: f32[2,128,128], index: 7, kind: input, shape index: {}]
  %s8 = inlined_call_operand.vmem [shape: f32[1,128], index: 8, kind: input, shape index: {}]
  %s9 = inlined_call_operand.hbm [shape: f32[2,128,128], index: 9, kind: input, shape index: {}]
  %s10 = inlined_call_operand.vmem [shape: f32[1,128], index: 10, kind: input, shape index: {}]
  %s11 = inlined_call_operand.hbm [shape: f32[128,128], index: 11, kind: input, shape index: {}]
  %s12 = inlined_call_operand.vmem [shape: f32[1,128], index: 12, kind: input, shape index: {}]
  %s13 = inlined_call_operand.hbm [shape: f32[128,128], index: 13, kind: input, shape index: {}]
  %s14 = inlined_call_operand.vmem [shape: f32[1,128], index: 14, kind: input, shape index: {}]
  %s15 = inlined_call_operand.hbm [shape: f32[2,128], index: 15, kind: output, shape index: {}]
  %s16 = sld [smem:[#allocation0]]
  $region102: #{tpu_custom_call.1} parent=0
    _
  %s18 = ssub.s32 1, %s16
  %s19 = scalar_select 0, %s18, %s16
  $region1: #{tpu_custom_call.1} parent=0
    #allocation3 [shape = 'u8[16384]{0}', space=vmem, size = 0x4000, scoped, tag = 'input window, operand 0, single buffered']
    #allocation4 [shape = 's32[1]{0}', space=sflag, size = 0x4, scoped, tag = 'scoped memory for tpu_custom_call.1']
    #allocation5 [shape = 's32[1]{0}', space=sflag, size = 0x4, scoped, tag = 'scoped memory for tpu_custom_call.1']
    #allocation6 [shape = 'u8[131072]{0}', space=vmem, size = 0x20000, scoped, tag = 'input window, operand 1, single buffered']
    #allocation7 [shape = 's32[1]{0}', space=sflag, size = 0x4, scoped, tag = 'scoped memory for tpu_custom_call.1']
    #allocation8 [shape = 'u8[131072]{0}', space=vmem, size = 0x20000, scoped, tag = 'input window, operand 3, single buffered']
    #allocation9 [shape = 'u8[65536]{0}', space=vmem, size = 0x10000, scoped, tag = 'input window, operand 5, single buffered']
    #allocation10 [shape = 's32[1]{0}', space=sflag, size = 0x4, scoped, tag = 'scoped memory for tpu_custom_call.1']
    #allocation11 [shape = 'u8[131072]{0}', space=vmem, size = 0x20000, scoped, tag = 'input window, operand 7, single buffered']
    #allocation12 [shape = 'u8[131072]{0}', space=vmem, size = 0x20000, scoped, tag = 'input window, operand 9, single buffered']
    #allocation13 [shape = 's32[1]{0}', space=sflag, size = 0x4, scoped, tag = 'scoped memory for tpu_custom_call.1']
    #allocation14 [shape = 'u8[65536]{0}', space=vmem, size = 0x10000, scoped, tag = 'input window, operand 11, single buffered']
    #allocation15 [shape = 'u8[65536]{0}', space=vmem, size = 0x10000, scoped, tag = 'input window, operand 13, single buffered']
    #allocation16 [shape = 's32[1]{0}', space=sflag, size = 0x4, scoped, tag = 'scoped memory for tpu_custom_call.1']
    #allocation17 [shape = 'u8[1024]{0}', space=vmem, size = 0x400, scoped, tag = 'output window, operand 0, single buffered']
    %20 = vsyncpa [#allocation4], 0
    %21 = vsyncpa [#allocation7], 0
    %22 = vsyncpa [#allocation10], 0
    %23 = vsyncpa [#allocation13], 0
    %24 = vsyncpa [#allocation16], 0
    %25 = vsyncpa [#allocation5], 0
    // Predicated region
    $region2: #{tpu_custom_call.1} parent=1 // pred_check
      _
    $region3: #{tpu_custom_call.1} parent=1 // pred_check_branch
      %27 = sbr.rel (0) target = $region5
    $region4: #{tpu_custom_call.1} parent=1 // pred_region
      %s29 = ssub.s32 512, 512
      %30 = vsyncadd [#allocation4], %s29
      %s31 = sshll.u32 [#allocation3], 4
      %s32 = int_to_ptr.vmem [resolvable:$true] %s31
      %37 = dma.hbm_to_vmem [thread:$0]  %s0, 512, %s32, [#allocation4], 128, 128, 8
    $region5: #{tpu_custom_call.1} parent=1 // pred_fallthru
      _
    // Predicated region
    $region6: #{tpu_custom_call.1} parent=1 // pred_check
      _
    $region7: #{tpu_custom_call.1} parent=1 // pred_check_branch
      %39 = sbr.rel (0) target = $region9
    $region8: #{tpu_custom_call.1} parent=1 // pred_region
      %s41 = ssub.s32 4096, 4096
      %42 = vsyncadd [#allocation7], %s41
      %s43 = sshll.u32 [#allocation6], 4
      %s44 = int_to_ptr.vmem [resolvable:$true] %s43
      %49 = dma.hbm_to_vmem [thread:$0]  %s1, 4096, %s44, [#allocation7], 128, 128, 8
    $region9: #{tpu_custom_call.1} parent=1 // pred_fallthru
      _
    // Predicated region
    $region10: #{tpu_custom_call.1} parent=1 // pred_check
      _
    $region11: #{tpu_custom_call.1} parent=1 // pred_check_branch
      %51 = sbr.rel (0) target = $region13
    $region12: #{tpu_custom_call.1} parent=1 // pred_region
      _
    $region13: #{tpu_custom_call.1} parent=1 // pred_fallthru
      _
    // Predicated region
    $region14: #{tpu_custom_call.1} parent=1 // pred_check
      _
    $region15: #{tpu_custom_call.1} parent=1 // pred_check_branch
      %53 = sbr.rel (0) target = $region17
    $region16: #{tpu_custom_call.1} parent=1 // pred_region
      %s55 = ssub.s32 4096, 4096
      %56 = vsyncadd [#allocation7], %s55
      %s57 = sshll.u32 [#allocation8], 4
      %s58 = int_to_ptr.vmem [resolvable:$true] %s57
      %63 = dma.hbm_to_vmem [thread:$0]  %s3, 4096, %s58, [#allocation7], 128, 128, 8
    $region17: #{tpu_custom_call.1} parent=1 // pred_fallthru
      _
    // Predicated region
    $region18: #{tpu_custom_call.1} parent=1 // pred_check
      _
    $region19: #{tpu_custom_call.1} parent=1 // pred_check_branch
      %65 = sbr.rel (0) target = $region21
    $region20: #{tpu_custom_call.1} parent=1 // pred_region
      _
    $region21: #{tpu_custom_call.1} parent=1 // pred_fallthru
      _
    // Predicated region
    $region22: #{tpu_custom_call.1} parent=1 // pred_check
      _
    $region23: #{tpu_custom_call.1} parent=1 // pred_check_branch
      %67 = sbr.rel (0) target = $region25
    $region24: #{tpu_custom_call.1} parent=1 // pred_region
      %s69 = ssub.s32 2048, 2048
      %70 = vsyncadd [#allocation10], %s69
      %s71 = sshll.u32 [#allocation9], 4
      %s72 = int_to_ptr.vmem [resolvable:$true] %s71
      %77 = dma.hbm_to_vmem [thread:$0]  %s5, 2048, %s72, [#allocation10], 128, 128, 8
    $region25: #{tpu_custom_call.1} parent=1 // pred_fallthru
      _
    // Predicated region
    $region26: #{tpu_custom_call.1} parent=1 // pred_check
      _
    $region27: #{tpu_custom_call.1} parent=1 // pred_check_branch
      %79 = sbr.rel (0) target = $region29
    $region28: #{tpu_custom_call.1} parent=1 // pred_region
      _
    $region29: #{tpu_custom_call.1} parent=1 // pred_fallthru
      _
    // Predicated region
    $region30: #{tpu_custom_call.1} parent=1 // pred_check
      _
    $region31: #{tpu_custom_call.1} parent=1 // pred_check_branch
      %81 = sbr.rel (0) target = $region33
    $region32: #{tpu_custom_call.1} parent=1 // pred_region
      %s83 = ssub.s32 4096, 4096
      %84 = vsyncadd [#allocation10], %s83
      %s85 = sshll.u32 [#allocation11], 4
      %s86 = int_to_ptr.vmem [resolvable:$true] %s85
      %91 = dma.hbm_to_vmem [thread:$0]  %s7, 4096, %s86, [#allocation10], 128, 128, 8
    $region33: #{tpu_custom_call.1} parent=1 // pred_fallthru
      _
    // Predicated region
    $region34: #{tpu_custom_call.1} parent=1 // pred_check
      _
    $region35: #{tpu_custom_call.1} parent=1 // pred_check_branch
      %93 = sbr.rel (0) target = $region37
    $region36: #{tpu_custom_call.1} parent=1 // pred_region
      _
    $region37: #{tpu_custom_call.1} parent=1 // pred_fallthru
      _
    // Predicated region
    $region38: #{tpu_custom_call.1} parent=1 // pred_check
      _
    $region39: #{tpu_custom_call.1} parent=1 // pred_check_branch
      %95 = sbr.rel (0) target = $region41
    $region40: #{tpu_custom_call.1} parent=1 // pred_region
      %s97 = ssub.s32 4096, 4096
      %98 = vsyncadd [#allocation13], %s97
      %s99 = sshll.u32 [#allocation12], 4
      %s100 = int_to_ptr.vmem [resolvable:$true] %s99
      %105 = dma.hbm_to_vmem [thread:$0]  %s9, 4096, %s100, [#allocation13], 128, 128, 8
    $region41: #{tpu_custom_call.1} parent=1 // pred_fallthru
      _
    // Predicated region
    $region42: #{tpu_custom_call.1} parent=1 // pred_check
      _
    $region43: #{tpu_custom_call.1} parent=1 // pred_check_branch
      %107 = sbr.rel (0) target = $region45
    $region44: #{tpu_custom_call.1} parent=1 // pred_region
      _
    $region45: #{tpu_custom_call.1} parent=1 // pred_fallthru
      _
    // Predicated region
    $region46: #{tpu_custom_call.1} parent=1 // pred_check
      _
    $region47: #{tpu_custom_call.1} parent=1 // pred_check_branch
      %109 = sbr.rel (0) target = $region49
    $region48: #{tpu_custom_call.1} parent=1 // pred_region
      %s111 = ssub.s32 2048, 2048
      %112 = vsyncadd [#allocation13], %s111
      %s113 = sshll.u32 [#allocation14], 4
      %s114 = int_to_ptr.vmem [resolvable:$true] %s113
      %119 = dma.hbm_to_vmem [thread:$0]  %s11, 2048, %s114, [#allocation13], 128, 128, 8
    $region49: #{tpu_custom_call.1} parent=1 // pred_fallthru
      _
    // Predicated region
    $region50: #{tpu_custom_call.1} parent=1 // pred_check
      _
    $region51: #{tpu_custom_call.1} parent=1 // pred_check_branch
      %121 = sbr.rel (0) target = $region53
    $region52: #{tpu_custom_call.1} parent=1 // pred_region
      _
    $region53: #{tpu_custom_call.1} parent=1 // pred_fallthru
      _
    // Predicated region
    $region54: #{tpu_custom_call.1} parent=1 // pred_check
      _
    $region55: #{tpu_custom_call.1} parent=1 // pred_check_branch
      %123 = sbr.rel (0) target = $region57
    $region56: #{tpu_custom_call.1} parent=1 // pred_region
      %s125 = ssub.s32 2048, 2048
      %126 = vsyncadd [#allocation16], %s125
      %s127 = sshll.u32 [#allocation15], 4
      %s128 = int_to_ptr.vmem [resolvable:$true] %s127
      %133 = dma.hbm_to_vmem [thread:$0]  %s13, 2048, %s128, [#allocation16], 128, 128, 8
    $region57: #{tpu_custom_call.1} parent=1 // pred_fallthru
      _
    // Predicated region
    $region58: #{tpu_custom_call.1} parent=1 // pred_check
      _
    $region59: #{tpu_custom_call.1} parent=1 // pred_check_branch
      %135 = sbr.rel (0) target = $region61
    $region60: #{tpu_custom_call.1} parent=1 // pred_region
      _
    $region61: #{tpu_custom_call.1} parent=1 // pred_fallthru
      _
    // Predicated region
    $region62: #{tpu_custom_call.1} parent=1 // pred_check
      _
    $region63: #{tpu_custom_call.1} parent=1 // pred_check_branch
      %137 = sbr.rel (0) target = $region65
    $region64: #{tpu_custom_call.1} parent=1 // pred_region
      %138 = dma.done [#allocation4], 512
    $region65: #{tpu_custom_call.1} parent=1 // pred_fallthru
      _
    // Predicated region
    $region66: #{tpu_custom_call.1} parent=1 // pred_check
      _
    $region67: #{tpu_custom_call.1} parent=1 // pred_check_branch
      %140 = sbr.rel (0) target = $region69
    $region68: #{tpu_custom_call.1} parent=1 // pred_region
      %141 = dma.done [#allocation7], 4096
    $region69: #{tpu_custom_call.1} parent=1 // pred_fallthru
      _
    // Predicated region
    $region70: #{tpu_custom_call.1} parent=1 // pred_check
      _
    $region71: #{tpu_custom_call.1} parent=1 // pred_check_branch
      %143 = sbr.rel (0) target = $region73
    $region72: #{tpu_custom_call.1} parent=1 // pred_region
      %144 = dma.done [#allocation7], 4096
    $region73: #{tpu_custom_call.1} parent=1 // pred_fallthru
      _
    // Predicated region
    $region74: #{tpu_custom_call.1} parent=1 // pred_check
      _
    $region75: #{tpu_custom_call.1} parent=1 // pred_check_branch
      %146 = sbr.rel (0) target = $region77
    $region76: #{tpu_custom_call.1} parent=1 // pred_region
      %147 = dma.done [#allocation10], 2048
    $region77: #{tpu_custom_call.1} parent=1 // pred_fallthru
      _
    // Predicated region
    $region78: #{tpu_custom_call.1} parent=1 // pred_check
      _
    $region79: #{tpu_custom_call.1} parent=1 // pred_check_branch
      %149 = sbr.rel (0) target = $region81
    $region80: #{tpu_custom_call.1} parent=1 // pred_region
      %150 = dma.done [#allocation10], 4096
    $region81: #{tpu_custom_call.1} parent=1 // pred_fallthru
      _
    // Predicated region
    $region82: #{tpu_custom_call.1} parent=1 // pred_check
      _
    $region83: #{tpu_custom_call.1} parent=1 // pred_check_branch
      %152 = sbr.rel (0) target = $region85
    $region84: #{tpu_custom_call.1} parent=1 // pred_region
      %153 = dma.done [#allocation13], 4096
    $region85: #{tpu_custom_call.1} parent=1 // pred_fallthru
      _
    // Predicated region
    $region86: #{tpu_custom_call.1} parent=1 // pred_check
      _
    $region87: #{tpu_custom_call.1} parent=1 // pred_check_branch
      %155 = sbr.rel (0) target = $region89
    $region88: #{tpu_custom_call.1} parent=1 // pred_region
      %156 = dma.done [#allocation13], 2048
    $region89: #{tpu_custom_call.1} parent=1 // pred_fallthru
      _
    // Predicated region
    $region90: #{tpu_custom_call.1} parent=1 // pred_check
      _
    $region91: #{tpu_custom_call.1} parent=1 // pred_check_branch
      %158 = sbr.rel (0) target = $region93
    $region92: #{tpu_custom_call.1} parent=1 // pred_region
      %159 = dma.done [#allocation16], 2048
    $region93: #{tpu_custom_call.1} parent=1 // pred_fallthru
      _
    %v160 = vld [vmem:[#allocation3] sm:$0xff]
    %v161 = vld [vmem:[#allocation3 + $0x8] sm:$0xff]
    %v162 = vld [vmem:[#allocation3 + $0x10] sm:$0xff]
    %v163 = vld [vmem:[#allocation3 + $0x18] sm:$0xff]
    %v164 = vld [vmem:[%s2] sm:$0x1]
    %s165 = scalar_lea.vmem [#allocation6], 128
    %v166 = vld [vmem:[%s165] sm:$0xff]
    %v167 = vld [vmem:[%s165 + $0x8] sm:$0xff]
    %v168 = vld [vmem:[%s165 + $0x10] sm:$0xff]
    %v169 = vld [vmem:[%s165 + $0x18] sm:$0xff]
    %v170 = vld [vmem:[%s165 + $0x20] sm:$0xff]
    %v171 = vld [vmem:[%s165 + $0x28] sm:$0xff]
    %v172 = vld [vmem:[%s165 + $0x30] sm:$0xff]
    %v173 = vld [vmem:[%s165 + $0x38] sm:$0xff]
    %v174 = vld [vmem:[%s165 + $0x40] sm:$0xff]
    %v175 = vld [vmem:[%s165 + $0x48] sm:$0xff]
    %v176 = vld [vmem:[%s165 + $0x50] sm:$0xff]
    %v177 = vld [vmem:[%s165 + $0x58] sm:$0xff]
    %v178 = vld [vmem:[%s165 + $0x60] sm:$0xff]
    %v179 = vld [vmem:[%s165 + $0x68] sm:$0xff]
    %v180 = vld [vmem:[%s165 + $0x70] sm:$0xff]
    %v181 = vld [vmem:[%s165 + $0x78] sm:$0xff]
    %182 = vmatprep.subr.mxu0 0.0
    %183 = vmatpush1.msra.mxu0 %v181
    %184 = vmatprep.subr.mxu0 0.0
    %185 = vmatpush1.msra.mxu0 %v180
    %186 = vmatprep.subr.mxu0 0.0
    %187 = vmatpush1.msra.mxu0 %v179
    %188 = vmatprep.subr.mxu0 0.0
    %189 = vmatpush1.msra.mxu0 %v178
    %190 = vmatprep.subr.mxu0 0.0
    %191 = vmatpush1.msra.mxu0 %v177
    %192 = vmatprep.subr.mxu0 0.0
    %193 = vmatpush1.msra.mxu0 %v176
    %194 = vmatprep.subr.mxu0 0.0
    %195 = vmatpush1.msra.mxu0 %v175
    %196 = vmatprep.subr.mxu0 0.0
    %197 = vmatpush1.msra.mxu0 %v174
    %198 = vmatprep.subr.mxu0 0.0
    %199 = vmatpush1.msra.mxu0 %v173
    %200 = vmatprep.subr.mxu0 0.0
    %201 = vmatpush1.msra.mxu0 %v172
    %202 = vmatprep.subr.mxu0 0.0
    %203 = vmatpush1.msra.mxu0 %v171
    %204 = vmatprep.subr.mxu0 0.0
    %205 = vmatpush1.msra.mxu0 %v170
    %206 = vmatprep.subr.mxu0 0.0
    %207 = vmatpush1.msra.mxu0 %v169
    %208 = vmatprep.subr.mxu0 0.0
    %209 = vmatpush1.msra.mxu0 %v168
    %210 = vmatprep.subr.mxu0 0.0
    %211 = vmatpush1.msra.mxu0 %v167
    %212 = vmatprep.subr.mxu0 0.0
    %213 = vmatpush1.msra.mxu0 %v166
    %214 = vmatprep.subr.mxu0 0.0
    %215 = vmatpush2.msra.mxu0 0.0
    %216 = vmatprep.subr.mxu0 0.0
    %217 = vmatpush2.msra.mxu0 0.0
    %218 = vmatprep.subr.mxu0 0.0
    %219 = vmatpush2.msra.mxu0 0.0
    %220 = vmatprep.subr.mxu0 0.0
    %221 = vmatpush2.msra.mxu0 0.0
    %222 = vmatprep.subr.mxu0 0.0
    %223 = vmatpush2.msra.mxu0 0.0
    %224 = vmatprep.subr.mxu0 0.0
    %225 = vmatpush2.msra.mxu0 0.0
    %226 = vmatprep.subr.mxu0 0.0
    %227 = vmatpush2.msra.mxu0 0.0
    %228 = vmatprep.subr.mxu0 0.0
    %229 = vmatpush2.msra.mxu0 0.0
    %230 = vmatprep.subr.mxu0 0.0
    %231 = vmatpush2.msra.mxu0 0.0
    %232 = vmatprep.subr.mxu0 0.0
    %233 = vmatpush2.msra.mxu0 0.0
    %234 = vmatprep.subr.mxu0 0.0
    %235 = vmatpush2.msra.mxu0 0.0
    %236 = vmatprep.subr.mxu0 0.0
    %237 = vmatpush2.msra.mxu0 0.0
    %238 = vmatprep.subr.mxu0 0.0
    %239 = vmatpush2.msra.mxu0 0.0
    %240 = vmatprep.subr.mxu0 0.0
    %241 = vmatpush2.msra.mxu0 0.0
    %242 = vmatprep.subr.mxu0 0.0
    %243 = vmatpush2.msra.mxu0 0.0
    %244 = vmatprep.subr.mxu0 0.0
    %245 = vmatpush2.msra.mxu0 0.0
    %246 = vmatprep.mubr.f32.mxu0 0.0
    %247 = vmatmul.mubr.f32.gmra.mxu0 %v160
    %v248 = vpop.f32.mrf.mxu0
    %v249 = vadd.f32 0.0, %v248
    %v250 = vpop.f32.mrf.mxu0
    %251 = vmatprep.mubr.f32.mxu0 0.0
    %252 = vmatmul.mubr.f32.gmra.mxu0 %v161
    %v253 = vpop.f32.mrf.mxu0
    %v254 = vadd.f32 0.0, %v253
    %v255 = vpop.f32.mrf.mxu0
    %256 = vmatprep.mubr.f32.mxu0 0.0
    %257 = vmatmul.mubr.f32.gmra.mxu0 %v162
    %v258 = vpop.f32.mrf.mxu0
    %v259 = vadd.f32 0.0, %v258
    %v260 = vpop.f32.mrf.mxu0
    %261 = vmatprep.mubr.f32.mxu0 0.0
    %262 = vmatmul.mubr.f32.gmra.mxu0 %v163
    %v263 = vpop.f32.mrf.mxu0
    %v264 = vadd.f32 0.0, %v263
    %v265 = vpop.f32.mrf.mxu0
    %266 = vdwg.mxu0
    %v268 = vlaneseq
    %v269 = vshrl.u32 %v268, 7
    %v270 = vsub.s32 0, %v269
    %v271 = vrot.slane %v164, %v270
    %v273 = vadd.f32 %v271, %v249
    %v274 = vadd.f32 %v271, %v254
    %v275 = vadd.f32 %v271, %v259
    %v276 = vadd.f32 %v271, %v264
    %277 = vst [vmem:[#allocation2] sm:$0xff] %v273
    %278 = vst [vmem:[#allocation2 + $0x8] sm:$0xff] %v274
    %279 = vst [vmem:[#allocation2 + $0x10] sm:$0xff] %v275
    %280 = vst [vmem:[#allocation2 + $0x18] sm:$0xff] %v276
    %v281 = vld [vmem:[#allocation6] sm:$0xff]
    %v282 = vld [vmem:[#allocation6 + $0x8] sm:$0xff]
    %v283 = vld [vmem:[#allocation6 + $0x10] sm:$0xff]
    %v284 = vld [vmem:[#allocation6 + $0x18] sm:$0xff]
    %v285 = vld [vmem:[#allocation6 + $0x20] sm:$0xff]
    %v286 = vld [vmem:[#allocation6 + $0x28] sm:$0xff]
    %v287 = vld [vmem:[#allocation6 + $0x30] sm:$0xff]
    %v288 = vld [vmem:[#allocation6 + $0x38] sm:$0xff]
    %v289 = vld [vmem:[#allocation6 + $0x40] sm:$0xff]
    %v290 = vld [vmem:[#allocation6 + $0x48] sm:$0xff]
    %v291 = vld [vmem:[#allocation6 + $0x50] sm:$0xff]
    %v292 = vld [vmem:[#allocation6 + $0x58] sm:$0xff]
    %v293 = vld [vmem:[#allocation6 + $0x60] sm:$0xff]
    %v294 = vld [vmem:[#allocation6 + $0x68] sm:$0xff]
    %v295 = vld [vmem:[#allocation6 + $0x70] sm:$0xff]
    %v296 = vld [vmem:[#allocation6 + $0x78] sm:$0xff]
    %297 = vmatprep.subr.mxu0 0.0
    %298 = vmatpush1.msra.mxu0 %v296
    %299 = vmatprep.subr.mxu0 0.0
    %300 = vmatpush1.msra.mxu0 %v295
    %301 = vmatprep.subr.mxu0 0.0
    %302 = vmatpush1.msra.mxu0 %v294
    %303 = vmatprep.subr.mxu0 0.0
    %304 = vmatpush1.msra.mxu0 %v293
    %305 = vmatprep.subr.mxu0 0.0
    %306 = vmatpush1.msra.mxu0 %v292
    %307 = vmatprep.subr.mxu0 0.0
    %308 = vmatpush1.msra.mxu0 %v291
    %309 = vmatprep.subr.mxu0 0.0
    %310 = vmatpush1.msra.mxu0 %v290
    %311 = vmatprep.subr.mxu0 0.0
    %312 = vmatpush1.msra.mxu0 %v289
    %313 = vmatprep.subr.mxu0 0.0
    %314 = vmatpush1.msra.mxu0 %v288
    %315 = vmatprep.subr.mxu0 0.0
    %316 = vmatpush1.msra.mxu0 %v287
    %317 = vmatprep.subr.mxu0 0.0
    %318 = vmatpush1.msra.mxu0 %v286
    %319 = vmatprep.subr.mxu0 0.0
    %320 = vmatpush1.msra.mxu0 %v285
    %321 = vmatprep.subr.mxu0 0.0
    %322 = vmatpush1.msra.mxu0 %v284
    %323 = vmatprep.subr.mxu0 0.0
    %324 = vmatpush1.msra.mxu0 %v283
    %325 = vmatprep.subr.mxu0 0.0
    %326 = vmatpush1.msra.mxu0 %v282
    %327 = vmatprep.subr.mxu0 0.0
    %328 = vmatpush1.msra.mxu0 %v281
    %329 = vmatprep.subr.mxu0 0.0
    %330 = vmatpush2.msra.mxu0 0.0
    %331 = vmatprep.subr.mxu0 0.0
    %332 = vmatpush2.msra.mxu0 0.0
    %333 = vmatprep.subr.mxu0 0.0
    %334 = vmatpush2.msra.mxu0 0.0
    %335 = vmatprep.subr.mxu0 0.0
    %336 = vmatpush2.msra.mxu0 0.0
    %337 = vmatprep.subr.mxu0 0.0
    %338 = vmatpush2.msra.mxu0 0.0
    %339 = vmatprep.subr.mxu0 0.0
    %340 = vmatpush2.msra.mxu0 0.0
    %341 = vmatprep.subr.mxu0 0.0
    %342 = vmatpush2.msra.mxu0 0.0
    %343 = vmatprep.subr.mxu0 0.0
    %344 = vmatpush2.msra.mxu0 0.0
    %345 = vmatprep.subr.mxu0 0.0
    %346 = vmatpush2.msra.mxu0 0.0
    %347 = vmatprep.subr.mxu0 0.0
    %348 = vmatpush2.msra.mxu0 0.0
    %349 = vmatprep.subr.mxu0 0.0
    %350 = vmatpush2.msra.mxu0 0.0
    %351 = vmatprep.subr.mxu0 0.0
    %352 = vmatpush2.msra.mxu0 0.0
    %353 = vmatprep.subr.mxu0 0.0
    %354 = vmatpush2.msra.mxu0 0.0
    %355 = vmatprep.subr.mxu0 0.0
    %356 = vmatpush2.msra.mxu0 0.0
    %357 = vmatprep.subr.mxu0 0.0
    %358 = vmatpush2.msra.mxu0 0.0
    %359 = vmatprep.subr.mxu0 0.0
    %360 = vmatpush2.msra.mxu0 0.0
    %361 = vmatprep.mubr.f32.mxu0 0.0
    %362 = vmatmul.mubr.f32.gmra.mxu0 %v160
    %v363 = vpop.f32.mrf.mxu0
    %v364 = vadd.f32 0.0, %v363
    %v365 = vpop.f32.mrf.mxu0
    %366 = vmatprep.mubr.f32.mxu0 0.0
    %367 = vmatmul.mubr.f32.gmra.mxu0 %v161
    %v368 = vpop.f32.mrf.mxu0
    %v369 = vadd.f32 0.0, %v368
    %v370 = vpop.f32.mrf.mxu0
    %371 = vmatprep.mubr.f32.mxu0 0.0
    %372 = vmatmul.mubr.f32.gmra.mxu0 %v162
    %v373 = vpop.f32.mrf.mxu0
    %v374 = vadd.f32 0.0, %v373
    %v375 = vpop.f32.mrf.mxu0
    %376 = vmatprep.mubr.f32.mxu0 0.0
    %377 = vmatmul.mubr.f32.gmra.mxu0 %v163
    %v378 = vpop.f32.mrf.mxu0
    %v379 = vadd.f32 0.0, %v378
    %v380 = vpop.f32.mrf.mxu0
    %381 = vdwg.mxu0
    %v382 = vld [vmem:[#allocation2 + $0x2] sm:$0xff]
    %v383 = vld [vmem:[#allocation2 + $0xa] sm:$0xff]
    %v384 = vld [vmem:[#allocation2 + $0x12] sm:$0xff]
    %v385 = vld [vmem:[#allocation2 + $0x1a] sm:$0x3f]
    %v386 = vadd.f32 %v382, %v364
    %v387 = vadd.f32 %v383, %v369
    %v388 = vadd.f32 %v384, %v374
    %v389 = vadd.f32 %v385, %v379
    %390 = vst [vmem:[#allocation2 + $0x2] sm:$0xff] %v386
    %391 = vst [vmem:[#allocation2 + $0xa] sm:$0xff] %v387
    %392 = vst [vmem:[#allocation2 + $0x12] sm:$0xff] %v388
    %393 = vst [vmem:[#allocation2 + $0x1a] sm:$0x3f] %v389
    %v394 = vld [vmem:[#allocation2] sm:$0xff]
    %v395 = vld [vmem:[#allocation2 + $0x8] sm:$0xff]
    %v396 = vld [vmem:[#allocation2 + $0x10] sm:$0xff]
    %v397 = vld [vmem:[#allocation2 + $0x18] sm:$0xff]
    %v398 = vmax.f32 %v394, 0.0
    %v399 = vmax.f32 %v395, 0.0
    %v400 = vmax.f32 %v396, 0.0
    %v401 = vmax.f32 %v397, 0.0
    %v402 = vld [vmem:[%s4] sm:$0x1]
    %s403 = scalar_lea.vmem [#allocation8], 128
    %v404 = vld [vmem:[%s403] sm:$0xff]
    %v405 = vld [vmem:[%s403 + $0x8] sm:$0xff]
    %v406 = vld [vmem:[%s403 + $0x10] sm:$0xff]
    %v407 = vld [vmem:[%s403 + $0x18] sm:$0xff]
    %v408 = vld [vmem:[%s403 + $0x20] sm:$0xff]
    %v409 = vld [vmem:[%s403 + $0x28] sm:$0xff]
    %v410 = vld [vmem:[%s403 + $0x30] sm:$0xff]
    %v411 = vld [vmem:[%s403 + $0x38] sm:$0xff]
    %v412 = vld [vmem:[%s403 + $0x40] sm:$0xff]
    %v413 = vld [vmem:[%s403 + $0x48] sm:$0xff]
    %v414 = vld [vmem:[%s403 + $0x50] sm:$0xff]
    %v415 = vld [vmem:[%s403 + $0x58] sm:$0xff]
    %v416 = vld [vmem:[%s403 + $0x60] sm:$0xff]
    %v417 = vld [vmem:[%s403 + $0x68] sm:$0xff]
    %v418 = vld [vmem:[%s403 + $0x70] sm:$0xff]
    %v419 = vld [vmem:[%s403 + $0x78] sm:$0xff]
    %420 = vmatprep.subr.mxu0 0.0
    %421 = vmatpush1.msra.mxu0 %v419
    %422 = vmatprep.subr.mxu0 0.0
    %423 = vmatpush1.msra.mxu0 %v418
    %424 = vmatprep.subr.mxu0 0.0
    %425 = vmatpush1.msra.mxu0 %v417
    %426 = vmatprep.subr.mxu0 0.0
    %427 = vmatpush1.msra.mxu0 %v416
    %428 = vmatprep.subr.mxu0 0.0
    %429 = vmatpush1.msra.mxu0 %v415
    %430 = vmatprep.subr.mxu0 0.0
    %431 = vmatpush1.msra.mxu0 %v414
    %432 = vmatprep.subr.mxu0 0.0
    %433 = vmatpush1.msra.mxu0 %v413
    %434 = vmatprep.subr.mxu0 0.0
    %435 = vmatpush1.msra.mxu0 %v412
    %436 = vmatprep.subr.mxu0 0.0
    %437 = vmatpush1.msra.mxu0 %v411
    %438 = vmatprep.subr.mxu0 0.0
    %439 = vmatpush1.msra.mxu0 %v410
    %440 = vmatprep.subr.mxu0 0.0
    %441 = vmatpush1.msra.mxu0 %v409
    %442 = vmatprep.subr.mxu0 0.0
    %443 = vmatpush1.msra.mxu0 %v408
    %444 = vmatprep.subr.mxu0 0.0
    %445 = vmatpush1.msra.mxu0 %v407
    %446 = vmatprep.subr.mxu0 0.0
    %447 = vmatpush1.msra.mxu0 %v406
    %448 = vmatprep.subr.mxu0 0.0
    %449 = vmatpush1.msra.mxu0 %v405
    %450 = vmatprep.subr.mxu0 0.0
    %451 = vmatpush1.msra.mxu0 %v404
    %452 = vmatprep.subr.mxu0 0.0
    %453 = vmatpush2.msra.mxu0 0.0
    %454 = vmatprep.subr.mxu0 0.0
    %455 = vmatpush2.msra.mxu0 0.0
    %456 = vmatprep.subr.mxu0 0.0
    %457 = vmatpush2.msra.mxu0 0.0
    %458 = vmatprep.subr.mxu0 0.0
    %459 = vmatpush2.msra.mxu0 0.0
    %460 = vmatprep.subr.mxu0 0.0
    %461 = vmatpush2.msra.mxu0 0.0
    %462 = vmatprep.subr.mxu0 0.0
    %463 = vmatpush2.msra.mxu0 0.0
    %464 = vmatprep.subr.mxu0 0.0
    %465 = vmatpush2.msra.mxu0 0.0
    %466 = vmatprep.subr.mxu0 0.0
    %467 = vmatpush2.msra.mxu0 0.0
    %468 = vmatprep.subr.mxu0 0.0
    %469 = vmatpush2.msra.mxu0 0.0
    %470 = vmatprep.subr.mxu0 0.0
    %471 = vmatpush2.msra.mxu0 0.0
    %472 = vmatprep.subr.mxu0 0.0
    %473 = vmatpush2.msra.mxu0 0.0
    %474 = vmatprep.subr.mxu0 0.0
    %475 = vmatpush2.msra.mxu0 0.0
    %476 = vmatprep.subr.mxu0 0.0
    %477 = vmatpush2.msra.mxu0 0.0
    %478 = vmatprep.subr.mxu0 0.0
    %479 = vmatpush2.msra.mxu0 0.0
    %480 = vmatprep.subr.mxu0 0.0
    %481 = vmatpush2.msra.mxu0 0.0
    %482 = vmatprep.subr.mxu0 0.0
    %483 = vmatpush2.msra.mxu0 0.0
    %484 = vmatprep.mubr.f32.mxu0 0.0
    %485 = vmatmul.mubr.f32.gmra.mxu0 %v398
    %v486 = vpop.f32.mrf.mxu0
    %v487 = vadd.f32 0.0, %v486
    %v488 = vpop.f32.mrf.mxu0
    %489 = vmatprep.mubr.f32.mxu0 0.0
    %490 = vmatmul.mubr.f32.gmra.mxu0 %v399
    %v491 = vpop.f32.mrf.mxu0
    %v492 = vadd.f32 0.0, %v491
    %v493 = vpop.f32.mrf.mxu0
    %494 = vmatprep.mubr.f32.mxu0 0.0
    %495 = vmatmul.mubr.f32.gmra.mxu0 %v400
    %v496 = vpop.f32.mrf.mxu0
    %v497 = vadd.f32 0.0, %v496
    %v498 = vpop.f32.mrf.mxu0
    %499 = vmatprep.mubr.f32.mxu0 0.0
    %500 = vmatmul.mubr.f32.gmra.mxu0 %v401
    %v501 = vpop.f32.mrf.mxu0
    %v502 = vadd.f32 0.0, %v501
    %v503 = vpop.f32.mrf.mxu0
    %504 = vdwg.mxu0
    %v506 = vlaneseq
    %v507 = vshrl.u32 %v506, 7
    %v508 = vsub.s32 0, %v507
    %v509 = vrot.slane %v402, %v508
    %v511 = vadd.f32 %v509, %v487
    %v512 = vadd.f32 %v509, %v492
    %v513 = vadd.f32 %v509, %v497
    %v514 = vadd.f32 %v509, %v502
    %515 = vst [vmem:[#allocation2] sm:$0xff] %v511
    %516 = vst [vmem:[#allocation2 + $0x8] sm:$0xff] %v512
    %517 = vst [vmem:[#allocation2 + $0x10] sm:$0xff] %v513
    %518 = vst [vmem:[#allocation2 + $0x18] sm:$0xff] %v514
    %v519 = vld [vmem:[#allocation8] sm:$0xff]
    %v520 = vld [vmem:[#allocation8 + $0x8] sm:$0xff]
    %v521 = vld [vmem:[#allocation8 + $0x10] sm:$0xff]
    %v522 = vld [vmem:[#allocation8 + $0x18] sm:$0xff]
    %v523 = vld [vmem:[#allocation8 + $0x20] sm:$0xff]
    %v524 = vld [vmem:[#allocation8 + $0x28] sm:$0xff]
    %v525 = vld [vmem:[#allocation8 + $0x30] sm:$0xff]
    %v526 = vld [vmem:[#allocation8 + $0x38] sm:$0xff]
    %v527 = vld [vmem:[#allocation8 + $0x40] sm:$0xff]
    %v528 = vld [vmem:[#allocation8 + $0x48] sm:$0xff]
    %v529 = vld [vmem:[#allocation8 + $0x50] sm:$0xff]
    %v530 = vld [vmem:[#allocation8 + $0x58] sm:$0xff]
    %v531 = vld [vmem:[#allocation8 + $0x60] sm:$0xff]
    %v532 = vld [vmem:[#allocation8 + $0x68] sm:$0xff]
    %v533 = vld [vmem:[#allocation8 + $0x70] sm:$0xff]
    %v534 = vld [vmem:[#allocation8 + $0x78] sm:$0xff]
    %535 = vmatprep.subr.mxu0 0.0
    %536 = vmatpush1.msra.mxu0 %v534
    %537 = vmatprep.subr.mxu0 0.0
    %538 = vmatpush1.msra.mxu0 %v533
    %539 = vmatprep.subr.mxu0 0.0
    %540 = vmatpush1.msra.mxu0 %v532
    %541 = vmatprep.subr.mxu0 0.0
    %542 = vmatpush1.msra.mxu0 %v531
    %543 = vmatprep.subr.mxu0 0.0
    %544 = vmatpush1.msra.mxu0 %v530
    %545 = vmatprep.subr.mxu0 0.0
    %546 = vmatpush1.msra.mxu0 %v529
    %547 = vmatprep.subr.mxu0 0.0
    %548 = vmatpush1.msra.mxu0 %v528
    %549 = vmatprep.subr.mxu0 0.0
    %550 = vmatpush1.msra.mxu0 %v527
    %551 = vmatprep.subr.mxu0 0.0
    %552 = vmatpush1.msra.mxu0 %v526
    %553 = vmatprep.subr.mxu0 0.0
    %554 = vmatpush1.msra.mxu0 %v525
    %555 = vmatprep.subr.mxu0 0.0
    %556 = vmatpush1.msra.mxu0 %v524
    %557 = vmatprep.subr.mxu0 0.0
    %558 = vmatpush1.msra.mxu0 %v523
    %559 = vmatprep.subr.mxu0 0.0
    %560 = vmatpush1.msra.mxu0 %v522
    %561 = vmatprep.subr.mxu0 0.0
    %562 = vmatpush1.msra.mxu0 %v521
    %563 = vmatprep.subr.mxu0 0.0
    %564 = vmatpush1.msra.mxu0 %v520
    %565 = vmatprep.subr.mxu0 0.0
    %566 = vmatpush1.msra.mxu0 %v519
    %567 = vmatprep.subr.mxu0 0.0
    %568 = vmatpush2.msra.mxu0 0.0
    %569 = vmatprep.subr.mxu0 0.0
    %570 = vmatpush2.msra.mxu0 0.0
    %571 = vmatprep.subr.mxu0 0.0
    %572 = vmatpush2.msra.mxu0 0.0
    %573 = vmatprep.subr.mxu0 0.0
    %574 = vmatpush2.msra.mxu0 0.0
    %575 = vmatprep.subr.mxu0 0.0
    %576 = vmatpush2.msra.mxu0 0.0
    %577 = vmatprep.subr.mxu0 0.0
    %578 = vmatpush2.msra.mxu0 0.0
    %579 = vmatprep.subr.mxu0 0.0
    %580 = vmatpush2.msra.mxu0 0.0
    %581 = vmatprep.subr.mxu0 0.0
    %582 = vmatpush2.msra.mxu0 0.0
    %583 = vmatprep.subr.mxu0 0.0
    %584 = vmatpush2.msra.mxu0 0.0
    %585 = vmatprep.subr.mxu0 0.0
    %586 = vmatpush2.msra.mxu0 0.0
    %587 = vmatprep.subr.mxu0 0.0
    %588 = vmatpush2.msra.mxu0 0.0
    %589 = vmatprep.subr.mxu0 0.0
    %590 = vmatpush2.msra.mxu0 0.0
    %591 = vmatprep.subr.mxu0 0.0
    %592 = vmatpush2.msra.mxu0 0.0
    %593 = vmatprep.subr.mxu0 0.0
    %594 = vmatpush2.msra.mxu0 0.0
    %595 = vmatprep.subr.mxu0 0.0
    %596 = vmatpush2.msra.mxu0 0.0
    %597 = vmatprep.subr.mxu0 0.0
    %598 = vmatpush2.msra.mxu0 0.0
    %599 = vmatprep.mubr.f32.mxu0 0.0
    %600 = vmatmul.mubr.f32.gmra.mxu0 %v398
    %v601 = vpop.f32.mrf.mxu0
    %v602 = vadd.f32 0.0, %v601
    %v603 = vpop.f32.mrf.mxu0
    %604 = vmatprep.mubr.f32.mxu0 0.0
    %605 = vmatmul.mubr.f32.gmra.mxu0 %v399
    %v606 = vpop.f32.mrf.mxu0
    %v607 = vadd.f32 0.0, %v606
    %v608 = vpop.f32.mrf.mxu0
    %609 = vmatprep.mubr.f32.mxu0 0.0
    %610 = vmatmul.mubr.f32.gmra.mxu0 %v400
    %v611 = vpop.f32.mrf.mxu0
    %v612 = vadd.f32 0.0, %v611
    %v613 = vpop.f32.mrf.mxu0
    %614 = vmatprep.mubr.f32.mxu0 0.0
    %615 = vmatmul.mubr.f32.gmra.mxu0 %v401
    %v616 = vpop.f32.mrf.mxu0
    %v617 = vadd.f32 0.0, %v616
    %v618 = vpop.f32.mrf.mxu0
    %619 = vdwg.mxu0
    %v620 = vld [vmem:[#allocation2 + $0x2] sm:$0xff]
    %v621 = vld [vmem:[#allocation2 + $0xa] sm:$0xff]
    %v622 = vld [vmem:[#allocation2 + $0x12] sm:$0xff]
    %v623 = vld [vmem:[#allocation2 + $0x1a] sm:$0x3f]
    %v624 = vadd.f32 %v620, %v602
    %v625 = vadd.f32 %v621, %v607
    %v626 = vadd.f32 %v622, %v612
    %v627 = vadd.f32 %v623, %v617
    %628 = vst [vmem:[#allocation2 + $0x2] sm:$0xff] %v624
    %629 = vst [vmem:[#allocation2 + $0xa] sm:$0xff] %v625
    %630 = vst [vmem:[#allocation2 + $0x12] sm:$0xff] %v626
    %631 = vst [vmem:[#allocation2 + $0x1a] sm:$0x3f] %v627
    %v632 = vld [vmem:[#allocation2] sm:$0xff]
    %v633 = vld [vmem:[#allocation2 + $0x8] sm:$0xff]
    %v634 = vld [vmem:[#allocation2 + $0x10] sm:$0xff]
    %v635 = vld [vmem:[#allocation2 + $0x18] sm:$0xff]
    %v636 = vmax.f32 %v632, 0.0
    %v637 = vmax.f32 %v633, 0.0
    %v638 = vmax.f32 %v634, 0.0
    %v639 = vmax.f32 %v635, 0.0
    %v640 = vld [vmem:[#allocation9] sm:$0xff]
    %v641 = vld [vmem:[#allocation9 + $0x8] sm:$0xff]
    %v642 = vld [vmem:[#allocation9 + $0x10] sm:$0xff]
    %v643 = vld [vmem:[#allocation9 + $0x18] sm:$0xff]
    %v644 = vld [vmem:[#allocation9 + $0x20] sm:$0xff]
    %v645 = vld [vmem:[#allocation9 + $0x28] sm:$0xff]
    %v646 = vld [vmem:[#allocation9 + $0x30] sm:$0xff]
    %v647 = vld [vmem:[#allocation9 + $0x38] sm:$0xff]
    %v648 = vld [vmem:[#allocation9 + $0x40] sm:$0xff]
    %v649 = vld [vmem:[#allocation9 + $0x48] sm:$0xff]
    %v650 = vld [vmem:[#allocation9 + $0x50] sm:$0xff]
    %v651 = vld [vmem:[#allocation9 + $0x58] sm:$0xff]
    %v652 = vld [vmem:[#allocation9 + $0x60] sm:$0xff]
    %v653 = vld [vmem:[#allocation9 + $0x68] sm:$0xff]
    %v654 = vld [vmem:[#allocation9 + $0x70] sm:$0xff]
    %v655 = vld [vmem:[#allocation9 + $0x78] sm:$0xff]
    %v656 = vld [vmem:[%s6] sm:$0x1]
    %v658 = vlaneseq
    %v659 = vshrl.u32 %v658, 7
    %v660 = vsub.s32 0, %v659
    %v661 = vrot.slane %v656, %v660
    %663 = vmatprep.subr.mxu0 0.0
    %664 = vmatpush1.msra.mxu0 %v655
    %665 = vmatprep.subr.mxu0 0.0
    %666 = vmatpush1.msra.mxu0 %v654
    %667 = vmatprep.subr.mxu0 0.0
    %668 = vmatpush1.msra.mxu0 %v653
    %669 = vmatprep.subr.mxu0 0.0
    %670 = vmatpush1.msra.mxu0 %v652
    %671 = vmatprep.subr.mxu0 0.0
    %672 = vmatpush1.msra.mxu0 %v651
    %673 = vmatprep.subr.mxu0 0.0
    %674 = vmatpush1.msra.mxu0 %v650
    %675 = vmatprep.subr.mxu0 0.0
    %676 = vmatpush1.msra.mxu0 %v649
    %677 = vmatprep.subr.mxu0 0.0
    %678 = vmatpush1.msra.mxu0 %v648
    %679 = vmatprep.subr.mxu0 0.0
    %680 = vmatpush1.msra.mxu0 %v647
    %681 = vmatprep.subr.mxu0 0.0
    %682 = vmatpush1.msra.mxu0 %v646
    %683 = vmatprep.subr.mxu0 0.0
    %684 = vmatpush1.msra.mxu0 %v645
    %685 = vmatprep.subr.mxu0 0.0
    %686 = vmatpush1.msra.mxu0 %v644
    %687 = vmatprep.subr.mxu0 0.0
    %688 = vmatpush1.msra.mxu0 %v643
    %689 = vmatprep.subr.mxu0 0.0
    %690 = vmatpush1.msra.mxu0 %v642
    %691 = vmatprep.subr.mxu0 0.0
    %692 = vmatpush1.msra.mxu0 %v641
    %693 = vmatprep.subr.mxu0 0.0
    %694 = vmatpush1.msra.mxu0 %v640
    %695 = vmatprep.subr.mxu0 0.0
    %696 = vmatpush2.msra.mxu0 0.0
    %697 = vmatprep.subr.mxu0 0.0
    %698 = vmatpush2.msra.mxu0 0.0
    %699 = vmatprep.subr.mxu0 0.0
    %700 = vmatpush2.msra.mxu0 0.0
    %701 = vmatprep.subr.mxu0 0.0
    %702 = vmatpush2.msra.mxu0 0.0
    %703 = vmatprep.subr.mxu0 0.0
    %704 = vmatpush2.msra.mxu0 0.0
    %705 = vmatprep.subr.mxu0 0.0
    %706 = vmatpush2.msra.mxu0 0.0
    %707 = vmatprep.subr.mxu0 0.0
    %708 = vmatpush2.msra.mxu0 0.0
    %709 = vmatprep.subr.mxu0 0.0
    %710 = vmatpush2.msra.mxu0 0.0
    %711 = vmatprep.subr.mxu0 0.0
    %712 = vmatpush2.msra.mxu0 0.0
    %713 = vmatprep.subr.mxu0 0.0
    %714 = vmatpush2.msra.mxu0 0.0
    %715 = vmatprep.subr.mxu0 0.0
    %716 = vmatpush2.msra.mxu0 0.0
    %717 = vmatprep.subr.mxu0 0.0
    %718 = vmatpush2.msra.mxu0 0.0
    %719 = vmatprep.subr.mxu0 0.0
    %720 = vmatpush2.msra.mxu0 0.0
    %721 = vmatprep.subr.mxu0 0.0
    %722 = vmatpush2.msra.mxu0 0.0
    %723 = vmatprep.subr.mxu0 0.0
    %724 = vmatpush2.msra.mxu0 0.0
    %725 = vmatprep.subr.mxu0 0.0
    %726 = vmatpush2.msra.mxu0 0.0
    %727 = vmatprep.mubr.f32.mxu0 0.0
    %728 = vmatmul.mubr.f32.gmra.mxu0 %v160
    %v729 = vpop.f32.mrf.mxu0
    %v730 = vadd.f32 %v661, %v729
    %v731 = vpop.f32.mrf.mxu0
    %732 = vmatprep.mubr.f32.mxu0 0.0
    %733 = vmatmul.mubr.f32.gmra.mxu0 %v161
    %v734 = vpop.f32.mrf.mxu0
    %v735 = vadd.f32 %v661, %v734
    %v736 = vpop.f32.mrf.mxu0
    %737 = vmatprep.mubr.f32.mxu0 0.0
    %738 = vmatmul.mubr.f32.gmra.mxu0 %v162
    %v739 = vpop.f32.mrf.mxu0
    %v740 = vadd.f32 %v661, %v739
    %v741 = vpop.f32.mrf.mxu0
    %742 = vmatprep.mubr.f32.mxu0 0.0
    %743 = vmatmul.mubr.f32.gmra.mxu0 %v163
    %v744 = vpop.f32.mrf.mxu0
    %v745 = vadd.f32 %v661, %v744
    %v746 = vpop.f32.mrf.mxu0
    %747 = vdwg.mxu0
    %v748 = vadd.f32 %v636, %v730
    %v749 = vadd.f32 %v637, %v735
    %v750 = vadd.f32 %v638, %v740
    %v751 = vadd.f32 %v639, %v745
    %v752 = vmax.f32 %v748, 0.0
    %v753 = vmax.f32 %v749, 0.0
    %v754 = vmax.f32 %v750, 0.0
    %v755 = vmax.f32 %v751, 0.0
    %v756 = vld [vmem:[%s8] sm:$0x1]
    %s757 = scalar_lea.vmem [#allocation11], 128
    %v758 = vld [vmem:[%s757] sm:$0xff]
    %v759 = vld [vmem:[%s757 + $0x8] sm:$0xff]
    %v760 = vld [vmem:[%s757 + $0x10] sm:$0xff]
    %v761 = vld [vmem:[%s757 + $0x18] sm:$0xff]
    %v762 = vld [vmem:[%s757 + $0x20] sm:$0xff]
    %v763 = vld [vmem:[%s757 + $0x28] sm:$0xff]
    %v764 = vld [vmem:[%s757 + $0x30] sm:$0xff]
    %v765 = vld [vmem:[%s757 + $0x38] sm:$0xff]
    %v766 = vld [vmem:[%s757 + $0x40] sm:$0xff]
    %v767 = vld [vmem:[%s757 + $0x48] sm:$0xff]
    %v768 = vld [vmem:[%s757 + $0x50] sm:$0xff]
    %v769 = vld [vmem:[%s757 + $0x58] sm:$0xff]
    %v770 = vld [vmem:[%s757 + $0x60] sm:$0xff]
    %v771 = vld [vmem:[%s757 + $0x68] sm:$0xff]
    %v772 = vld [vmem:[%s757 + $0x70] sm:$0xff]
    %v773 = vld [vmem:[%s757 + $0x78] sm:$0xff]
    %774 = vmatprep.subr.mxu0 0.0
    %775 = vmatpush1.msra.mxu0 %v773
    %776 = vmatprep.subr.mxu0 0.0
    %777 = vmatpush1.msra.mxu0 %v772
    %778 = vmatprep.subr.mxu0 0.0
    %779 = vmatpush1.msra.mxu0 %v771
    %780 = vmatprep.subr.mxu0 0.0
    %781 = vmatpush1.msra.mxu0 %v770
    %782 = vmatprep.subr.mxu0 0.0
    %783 = vmatpush1.msra.mxu0 %v769
    %784 = vmatprep.subr.mxu0 0.0
    %785 = vmatpush1.msra.mxu0 %v768
    %786 = vmatprep.subr.mxu0 0.0
    %787 = vmatpush1.msra.mxu0 %v767
    %788 = vmatprep.subr.mxu0 0.0
    %789 = vmatpush1.msra.mxu0 %v766
    %790 = vmatprep.subr.mxu0 0.0
    %791 = vmatpush1.msra.mxu0 %v765
    %792 = vmatprep.subr.mxu0 0.0
    %793 = vmatpush1.msra.mxu0 %v764
    %794 = vmatprep.subr.mxu0 0.0
    %795 = vmatpush1.msra.mxu0 %v763
    %796 = vmatprep.subr.mxu0 0.0
    %797 = vmatpush1.msra.mxu0 %v762
    %798 = vmatprep.subr.mxu0 0.0
    %799 = vmatpush1.msra.mxu0 %v761
    %800 = vmatprep.subr.mxu0 0.0
    %801 = vmatpush1.msra.mxu0 %v760
    %802 = vmatprep.subr.mxu0 0.0
    %803 = vmatpush1.msra.mxu0 %v759
    %804 = vmatprep.subr.mxu0 0.0
    %805 = vmatpush1.msra.mxu0 %v758
    %806 = vmatprep.subr.mxu0 0.0
    %807 = vmatpush2.msra.mxu0 0.0
    %808 = vmatprep.subr.mxu0 0.0
    %809 = vmatpush2.msra.mxu0 0.0
    %810 = vmatprep.subr.mxu0 0.0
    %811 = vmatpush2.msra.mxu0 0.0
    %812 = vmatprep.subr.mxu0 0.0
    %813 = vmatpush2.msra.mxu0 0.0
    %814 = vmatprep.subr.mxu0 0.0
    %815 = vmatpush2.msra.mxu0 0.0
    %816 = vmatprep.subr.mxu0 0.0
    %817 = vmatpush2.msra.mxu0 0.0
    %818 = vmatprep.subr.mxu0 0.0
    %819 = vmatpush2.msra.mxu0 0.0
    %820 = vmatprep.subr.mxu0 0.0
    %821 = vmatpush2.msra.mxu0 0.0
    %822 = vmatprep.subr.mxu0 0.0
    %823 = vmatpush2.msra.mxu0 0.0
    %824 = vmatprep.subr.mxu0 0.0
    %825 = vmatpush2.msra.mxu0 0.0
    %826 = vmatprep.subr.mxu0 0.0
    %827 = vmatpush2.msra.mxu0 0.0
    %828 = vmatprep.subr.mxu0 0.0
    %829 = vmatpush2.msra.mxu0 0.0
    %830 = vmatprep.subr.mxu0 0.0
    %831 = vmatpush2.msra.mxu0 0.0
    %832 = vmatprep.subr.mxu0 0.0
    %833 = vmatpush2.msra.mxu0 0.0
    %834 = vmatprep.subr.mxu0 0.0
    %835 = vmatpush2.msra.mxu0 0.0
    %836 = vmatprep.subr.mxu0 0.0
    %837 = vmatpush2.msra.mxu0 0.0
    %838 = vmatprep.mubr.f32.mxu0 0.0
    %839 = vmatmul.mubr.f32.gmra.mxu0 %v752
    %v840 = vpop.f32.mrf.mxu0
    %v841 = vadd.f32 0.0, %v840
    %v842 = vpop.f32.mrf.mxu0
    %843 = vmatprep.mubr.f32.mxu0 0.0
    %844 = vmatmul.mubr.f32.gmra.mxu0 %v753
    %v845 = vpop.f32.mrf.mxu0
    %v846 = vadd.f32 0.0, %v845
    %v847 = vpop.f32.mrf.mxu0
    %848 = vmatprep.mubr.f32.mxu0 0.0
    %849 = vmatmul.mubr.f32.gmra.mxu0 %v754
    %v850 = vpop.f32.mrf.mxu0
    %v851 = vadd.f32 0.0, %v850
    %v852 = vpop.f32.mrf.mxu0
    %853 = vmatprep.mubr.f32.mxu0 0.0
    %854 = vmatmul.mubr.f32.gmra.mxu0 %v755
    %v855 = vpop.f32.mrf.mxu0
    %v856 = vadd.f32 0.0, %v855
    %v857 = vpop.f32.mrf.mxu0
    %858 = vdwg.mxu0
    %v860 = vlaneseq
    %v861 = vshrl.u32 %v860, 7
    %v862 = vsub.s32 0, %v861
    %v863 = vrot.slane %v756, %v862
    %v865 = vadd.f32 %v863, %v841
    %v866 = vadd.f32 %v863, %v846
    %v867 = vadd.f32 %v863, %v851
    %v868 = vadd.f32 %v863, %v856
    %869 = vst [vmem:[#allocation2] sm:$0xff] %v865
    %870 = vst [vmem:[#allocation2 + $0x8] sm:$0xff] %v866
    %871 = vst [vmem:[#allocation2 + $0x10] sm:$0xff] %v867
    %872 = vst [vmem:[#allocation2 + $0x18] sm:$0xff] %v868
    %v873 = vld [vmem:[#allocation11] sm:$0xff]
    %v874 = vld [vmem:[#allocation11 + $0x8] sm:$0xff]
    %v875 = vld [vmem:[#allocation11 + $0x10] sm:$0xff]
    %v876 = vld [vmem:[#allocation11 + $0x18] sm:$0xff]
    %v877 = vld [vmem:[#allocation11 + $0x20] sm:$0xff]
    %v878 = vld [vmem:[#allocation11 + $0x28] sm:$0xff]
    %v879 = vld [vmem:[#allocation11 + $0x30] sm:$0xff]
    %v880 = vld [vmem:[#allocation11 + $0x38] sm:$0xff]
    %v881 = vld [vmem:[#allocation11 + $0x40] sm:$0xff]
    %v882 = vld [vmem:[#allocation11 + $0x48] sm:$0xff]
    %v883 = vld [vmem:[#allocation11 + $0x50] sm:$0xff]
    %v884 = vld [vmem:[#allocation11 + $0x58] sm:$0xff]
    %v885 = vld [vmem:[#allocation11 + $0x60] sm:$0xff]
    %v886 = vld [vmem:[#allocation11 + $0x68] sm:$0xff]
    %v887 = vld [vmem:[#allocation11 + $0x70] sm:$0xff]
    %v888 = vld [vmem:[#allocation11 + $0x78] sm:$0xff]
    %889 = vmatprep.subr.mxu0 0.0
    %890 = vmatpush1.msra.mxu0 %v888
    %891 = vmatprep.subr.mxu0 0.0
    %892 = vmatpush1.msra.mxu0 %v887
    %893 = vmatprep.subr.mxu0 0.0
    %894 = vmatpush1.msra.mxu0 %v886
    %895 = vmatprep.subr.mxu0 0.0
    %896 = vmatpush1.msra.mxu0 %v885
    %897 = vmatprep.subr.mxu0 0.0
    %898 = vmatpush1.msra.mxu0 %v884
    %899 = vmatprep.subr.mxu0 0.0
    %900 = vmatpush1.msra.mxu0 %v883
    %901 = vmatprep.subr.mxu0 0.0
    %902 = vmatpush1.msra.mxu0 %v882
    %903 = vmatprep.subr.mxu0 0.0
    %904 = vmatpush1.msra.mxu0 %v881
    %905 = vmatprep.subr.mxu0 0.0
    %906 = vmatpush1.msra.mxu0 %v880
    %907 = vmatprep.subr.mxu0 0.0
    %908 = vmatpush1.msra.mxu0 %v879
    %909 = vmatprep.subr.mxu0 0.0
    %910 = vmatpush1.msra.mxu0 %v878
    %911 = vmatprep.subr.mxu0 0.0
    %912 = vmatpush1.msra.mxu0 %v877
    %913 = vmatprep.subr.mxu0 0.0
    %914 = vmatpush1.msra.mxu0 %v876
    %915 = vmatprep.subr.mxu0 0.0
    %916 = vmatpush1.msra.mxu0 %v875
    %917 = vmatprep.subr.mxu0 0.0
    %918 = vmatpush1.msra.mxu0 %v874
    %919 = vmatprep.subr.mxu0 0.0
    %920 = vmatpush1.msra.mxu0 %v873
    %921 = vmatprep.subr.mxu0 0.0
    %922 = vmatpush2.msra.mxu0 0.0
    %923 = vmatprep.subr.mxu0 0.0
    %924 = vmatpush2.msra.mxu0 0.0
    %925 = vmatprep.subr.mxu0 0.0
    %926 = vmatpush2.msra.mxu0 0.0
    %927 = vmatprep.subr.mxu0 0.0
    %928 = vmatpush2.msra.mxu0 0.0
    %929 = vmatprep.subr.mxu0 0.0
    %930 = vmatpush2.msra.mxu0 0.0
    %931 = vmatprep.subr.mxu0 0.0
    %932 = vmatpush2.msra.mxu0 0.0
    %933 = vmatprep.subr.mxu0 0.0
    %934 = vmatpush2.msra.mxu0 0.0
    %935 = vmatprep.subr.mxu0 0.0
    %936 = vmatpush2.msra.mxu0 0.0
    %937 = vmatprep.subr.mxu0 0.0
    %938 = vmatpush2.msra.mxu0 0.0
    %939 = vmatprep.subr.mxu0 0.0
    %940 = vmatpush2.msra.mxu0 0.0
    %941 = vmatprep.subr.mxu0 0.0
    %942 = vmatpush2.msra.mxu0 0.0
    %943 = vmatprep.subr.mxu0 0.0
    %944 = vmatpush2.msra.mxu0 0.0
    %945 = vmatprep.subr.mxu0 0.0
    %946 = vmatpush2.msra.mxu0 0.0
    %947 = vmatprep.subr.mxu0 0.0
    %948 = vmatpush2.msra.mxu0 0.0
    %949 = vmatprep.subr.mxu0 0.0
    %950 = vmatpush2.msra.mxu0 0.0
    %951 = vmatprep.subr.mxu0 0.0
    %952 = vmatpush2.msra.mxu0 0.0
    %953 = vmatprep.mubr.f32.mxu0 0.0
    %954 = vmatmul.mubr.f32.gmra.mxu0 %v752
    %v955 = vpop.f32.mrf.mxu0
    %v956 = vadd.f32 0.0, %v955
    %v957 = vpop.f32.mrf.mxu0
    %958 = vmatprep.mubr.f32.mxu0 0.0
    %959 = vmatmul.mubr.f32.gmra.mxu0 %v753
    %v960 = vpop.f32.mrf.mxu0
    %v961 = vadd.f32 0.0, %v960
    %v962 = vpop.f32.mrf.mxu0
    %963 = vmatprep.mubr.f32.mxu0 0.0
    %964 = vmatmul.mubr.f32.gmra.mxu0 %v754
    %v965 = vpop.f32.mrf.mxu0
    %v966 = vadd.f32 0.0, %v965
    %v967 = vpop.f32.mrf.mxu0
    %968 = vmatprep.mubr.f32.mxu0 0.0
    %969 = vmatmul.mubr.f32.gmra.mxu0 %v755
    %v970 = vpop.f32.mrf.mxu0
    %v971 = vadd.f32 0.0, %v970
    %v972 = vpop.f32.mrf.mxu0
    %973 = vdwg.mxu0
    %v974 = vld [vmem:[#allocation2 + $0x4] sm:$0xff]
    %v975 = vld [vmem:[#allocation2 + $0xc] sm:$0xff]
    %v976 = vld [vmem:[#allocation2 + $0x14] sm:$0xff]
    %v977 = vld [vmem:[#allocation2 + $0x1c] sm:$0xf]
    %v978 = vadd.f32 %v974, %v956
    %v979 = vadd.f32 %v975, %v961
    %v980 = vadd.f32 %v976, %v966
    %v981 = vadd.f32 %v977, %v971
    %982 = vst [vmem:[#allocation2 + $0x4] sm:$0xff] %v978
    %983 = vst [vmem:[#allocation2 + $0xc] sm:$0xff] %v979
    %984 = vst [vmem:[#allocation2 + $0x14] sm:$0xff] %v980
    %985 = vst [vmem:[#allocation2 + $0x1c] sm:$0xf] %v981
    %v986 = vld [vmem:[#allocation2] sm:$0xff]
    %v987 = vld [vmem:[#allocation2 + $0x8] sm:$0xff]
    %v988 = vld [vmem:[#allocation2 + $0x10] sm:$0xff]
    %v989 = vld [vmem:[#allocation2 + $0x18] sm:$0xff]
    %v990 = vmax.f32 %v986, 0.0
    %v991 = vmax.f32 %v987, 0.0
    %v992 = vmax.f32 %v988, 0.0
    %v993 = vmax.f32 %v989, 0.0
    %v994 = vld [vmem:[%s10] sm:$0x1]
    %s995 = scalar_lea.vmem [#allocation12], 128
    %v996 = vld [vmem:[%s995] sm:$0xff]
    %v997 = vld [vmem:[%s995 + $0x8] sm:$0xff]
    %v998 = vld [vmem:[%s995 + $0x10] sm:$0xff]
    %v999 = vld [vmem:[%s995 + $0x18] sm:$0xff]
    %v1000 = vld [vmem:[%s995 + $0x20] sm:$0xff]
    %v1001 = vld [vmem:[%s995 + $0x28] sm:$0xff]
    %v1002 = vld [vmem:[%s995 + $0x30] sm:$0xff]
    %v1003 = vld [vmem:[%s995 + $0x38] sm:$0xff]
    %v1004 = vld [vmem:[%s995 + $0x40] sm:$0xff]
    %v1005 = vld [vmem:[%s995 + $0x48] sm:$0xff]
    %v1006 = vld [vmem:[%s995 + $0x50] sm:$0xff]
    %v1007 = vld [vmem:[%s995 + $0x58] sm:$0xff]
    %v1008 = vld [vmem:[%s995 + $0x60] sm:$0xff]
    %v1009 = vld [vmem:[%s995 + $0x68] sm:$0xff]
    %v1010 = vld [vmem:[%s995 + $0x70] sm:$0xff]
    %v1011 = vld [vmem:[%s995 + $0x78] sm:$0xff]
    %1012 = vmatprep.subr.mxu0 0.0
    %1013 = vmatpush1.msra.mxu0 %v1011
    %1014 = vmatprep.subr.mxu0 0.0
    %1015 = vmatpush1.msra.mxu0 %v1010
    %1016 = vmatprep.subr.mxu0 0.0
    %1017 = vmatpush1.msra.mxu0 %v1009
    %1018 = vmatprep.subr.mxu0 0.0
    %1019 = vmatpush1.msra.mxu0 %v1008
    %1020 = vmatprep.subr.mxu0 0.0
    %1021 = vmatpush1.msra.mxu0 %v1007
    %1022 = vmatprep.subr.mxu0 0.0
    %1023 = vmatpush1.msra.mxu0 %v1006
    %1024 = vmatprep.subr.mxu0 0.0
    %1025 = vmatpush1.msra.mxu0 %v1005
    %1026 = vmatprep.subr.mxu0 0.0
    %1027 = vmatpush1.msra.mxu0 %v1004
    %1028 = vmatprep.subr.mxu0 0.0
    %1029 = vmatpush1.msra.mxu0 %v1003
    %1030 = vmatprep.subr.mxu0 0.0
    %1031 = vmatpush1.msra.mxu0 %v1002
    %1032 = vmatprep.subr.mxu0 0.0
    %1033 = vmatpush1.msra.mxu0 %v1001
    %1034 = vmatprep.subr.mxu0 0.0
    %1035 = vmatpush1.msra.mxu0 %v1000
    %1036 = vmatprep.subr.mxu0 0.0
    %1037 = vmatpush1.msra.mxu0 %v999
    %1038 = vmatprep.subr.mxu0 0.0
    %1039 = vmatpush1.msra.mxu0 %v998
    %1040 = vmatprep.subr.mxu0 0.0
    %1041 = vmatpush1.msra.mxu0 %v997
    %1042 = vmatprep.subr.mxu0 0.0
    %1043 = vmatpush1.msra.mxu0 %v996
    %1044 = vmatprep.subr.mxu0 0.0
    %1045 = vmatpush2.msra.mxu0 0.0
    %1046 = vmatprep.subr.mxu0 0.0
    %1047 = vmatpush2.msra.mxu0 0.0
    %1048 = vmatprep.subr.mxu0 0.0
    %1049 = vmatpush2.msra.mxu0 0.0
    %1050 = vmatprep.subr.mxu0 0.0
    %1051 = vmatpush2.msra.mxu0 0.0
    %1052 = vmatprep.subr.mxu0 0.0
    %1053 = vmatpush2.msra.mxu0 0.0
    %1054 = vmatprep.subr.mxu0 0.0
    %1055 = vmatpush2.msra.mxu0 0.0
    %1056 = vmatprep.subr.mxu0 0.0
    %1057 = vmatpush2.msra.mxu0 0.0
    %1058 = vmatprep.subr.mxu0 0.0
    %1059 = vmatpush2.msra.mxu0 0.0
    %1060 = vmatprep.subr.mxu0 0.0
    %1061 = vmatpush2.msra.mxu0 0.0
    %1062 = vmatprep.subr.mxu0 0.0
    %1063 = vmatpush2.msra.mxu0 0.0
    %1064 = vmatprep.subr.mxu0 0.0
    %1065 = vmatpush2.msra.mxu0 0.0
    %1066 = vmatprep.subr.mxu0 0.0
    %1067 = vmatpush2.msra.mxu0 0.0
    %1068 = vmatprep.subr.mxu0 0.0
    %1069 = vmatpush2.msra.mxu0 0.0
    %1070 = vmatprep.subr.mxu0 0.0
    %1071 = vmatpush2.msra.mxu0 0.0
    %1072 = vmatprep.subr.mxu0 0.0
    %1073 = vmatpush2.msra.mxu0 0.0
    %1074 = vmatprep.subr.mxu0 0.0
    %1075 = vmatpush2.msra.mxu0 0.0
    %1076 = vmatprep.mubr.f32.mxu0 0.0
    %1077 = vmatmul.mubr.f32.gmra.mxu0 %v990
    %v1078 = vpop.f32.mrf.mxu0
    %v1079 = vadd.f32 0.0, %v1078
    %v1080 = vpop.f32.mrf.mxu0
    %1081 = vmatprep.mubr.f32.mxu0 0.0
    %1082 = vmatmul.mubr.f32.gmra.mxu0 %v991
    %v1083 = vpop.f32.mrf.mxu0
    %v1084 = vadd.f32 0.0, %v1083
    %v1085 = vpop.f32.mrf.mxu0
    %1086 = vmatprep.mubr.f32.mxu0 0.0
    %1087 = vmatmul.mubr.f32.gmra.mxu0 %v992
    %v1088 = vpop.f32.mrf.mxu0
    %v1089 = vadd.f32 0.0, %v1088
    %v1090 = vpop.f32.mrf.mxu0
    %1091 = vmatprep.mubr.f32.mxu0 0.0
    %1092 = vmatmul.mubr.f32.gmra.mxu0 %v993
    %v1093 = vpop.f32.mrf.mxu0
    %v1094 = vadd.f32 0.0, %v1093
    %v1095 = vpop.f32.mrf.mxu0
    %1096 = vdwg.mxu0
    %v1098 = vlaneseq
    %v1099 = vshrl.u32 %v1098, 7
    %v1100 = vsub.s32 0, %v1099
    %v1101 = vrot.slane %v994, %v1100
    %v1103 = vadd.f32 %v1101, %v1079
    %v1104 = vadd.f32 %v1101, %v1084
    %v1105 = vadd.f32 %v1101, %v1089
    %v1106 = vadd.f32 %v1101, %v1094
    %1107 = vst [vmem:[#allocation2] sm:$0xff] %v1103
    %1108 = vst [vmem:[#allocation2 + $0x8] sm:$0xff] %v1104
    %1109 = vst [vmem:[#allocation2 + $0x10] sm:$0xff] %v1105
    %1110 = vst [vmem:[#allocation2 + $0x18] sm:$0xff] %v1106
    %v1111 = vld [vmem:[#allocation12] sm:$0xff]
    %v1112 = vld [vmem:[#allocation12 + $0x8] sm:$0xff]
    %v1113 = vld [vmem:[#allocation12 + $0x10] sm:$0xff]
    %v1114 = vld [vmem:[#allocation12 + $0x18] sm:$0xff]
    %v1115 = vld [vmem:[#allocation12 + $0x20] sm:$0xff]
    %v1116 = vld [vmem:[#allocation12 + $0x28] sm:$0xff]
    %v1117 = vld [vmem:[#allocation12 + $0x30] sm:$0xff]
    %v1118 = vld [vmem:[#allocation12 + $0x38] sm:$0xff]
    %v1119 = vld [vmem:[#allocation12 + $0x40] sm:$0xff]
    %v1120 = vld [vmem:[#allocation12 + $0x48] sm:$0xff]
    %v1121 = vld [vmem:[#allocation12 + $0x50] sm:$0xff]
    %v1122 = vld [vmem:[#allocation12 + $0x58] sm:$0xff]
    %v1123 = vld [vmem:[#allocation12 + $0x60] sm:$0xff]
    %v1124 = vld [vmem:[#allocation12 + $0x68] sm:$0xff]
    %v1125 = vld [vmem:[#allocation12 + $0x70] sm:$0xff]
    %v1126 = vld [vmem:[#allocation12 + $0x78] sm:$0xff]
    %1127 = vmatprep.subr.mxu0 0.0
    %1128 = vmatpush1.msra.mxu0 %v1126
    %1129 = vmatprep.subr.mxu0 0.0
    %1130 = vmatpush1.msra.mxu0 %v1125
    %1131 = vmatprep.subr.mxu0 0.0
    %1132 = vmatpush1.msra.mxu0 %v1124
    %1133 = vmatprep.subr.mxu0 0.0
    %1134 = vmatpush1.msra.mxu0 %v1123
    %1135 = vmatprep.subr.mxu0 0.0
    %1136 = vmatpush1.msra.mxu0 %v1122
    %1137 = vmatprep.subr.mxu0 0.0
    %1138 = vmatpush1.msra.mxu0 %v1121
    %1139 = vmatprep.subr.mxu0 0.0
    %1140 = vmatpush1.msra.mxu0 %v1120
    %1141 = vmatprep.subr.mxu0 0.0
    %1142 = vmatpush1.msra.mxu0 %v1119
    %1143 = vmatprep.subr.mxu0 0.0
    %1144 = vmatpush1.msra.mxu0 %v1118
    %1145 = vmatprep.subr.mxu0 0.0
    %1146 = vmatpush1.msra.mxu0 %v1117
    %1147 = vmatprep.subr.mxu0 0.0
    %1148 = vmatpush1.msra.mxu0 %v1116
    %1149 = vmatprep.subr.mxu0 0.0
    %1150 = vmatpush1.msra.mxu0 %v1115
    %1151 = vmatprep.subr.mxu0 0.0
    %1152 = vmatpush1.msra.mxu0 %v1114
    %1153 = vmatprep.subr.mxu0 0.0
    %1154 = vmatpush1.msra.mxu0 %v1113
    %1155 = vmatprep.subr.mxu0 0.0
    %1156 = vmatpush1.msra.mxu0 %v1112
    %1157 = vmatprep.subr.mxu0 0.0
    %1158 = vmatpush1.msra.mxu0 %v1111
    %1159 = vmatprep.subr.mxu0 0.0
    %1160 = vmatpush2.msra.mxu0 0.0
    %1161 = vmatprep.subr.mxu0 0.0
    %1162 = vmatpush2.msra.mxu0 0.0
    %1163 = vmatprep.subr.mxu0 0.0
    %1164 = vmatpush2.msra.mxu0 0.0
    %1165 = vmatprep.subr.mxu0 0.0
    %1166 = vmatpush2.msra.mxu0 0.0
    %1167 = vmatprep.subr.mxu0 0.0
    %1168 = vmatpush2.msra.mxu0 0.0
    %1169 = vmatprep.subr.mxu0 0.0
    %1170 = vmatpush2.msra.mxu0 0.0
    %1171 = vmatprep.subr.mxu0 0.0
    %1172 = vmatpush2.msra.mxu0 0.0
    %1173 = vmatprep.subr.mxu0 0.0
    %1174 = vmatpush2.msra.mxu0 0.0
    %1175 = vmatprep.subr.mxu0 0.0
    %1176 = vmatpush2.msra.mxu0 0.0
    %1177 = vmatprep.subr.mxu0 0.0
    %1178 = vmatpush2.msra.mxu0 0.0
    %1179 = vmatprep.subr.mxu0 0.0
    %1180 = vmatpush2.msra.mxu0 0.0
    %1181 = vmatprep.subr.mxu0 0.0
    %1182 = vmatpush2.msra.mxu0 0.0
    %1183 = vmatprep.subr.mxu0 0.0
    %1184 = vmatpush2.msra.mxu0 0.0
    %1185 = vmatprep.subr.mxu0 0.0
    %1186 = vmatpush2.msra.mxu0 0.0
    %1187 = vmatprep.subr.mxu0 0.0
    %1188 = vmatpush2.msra.mxu0 0.0
    %1189 = vmatprep.subr.mxu0 0.0
    %1190 = vmatpush2.msra.mxu0 0.0
    %1191 = vmatprep.mubr.f32.mxu0 0.0
    %1192 = vmatmul.mubr.f32.gmra.mxu0 %v990
    %v1193 = vpop.f32.mrf.mxu0
    %v1194 = vadd.f32 0.0, %v1193
    %v1195 = vpop.f32.mrf.mxu0
    %1196 = vmatprep.mubr.f32.mxu0 0.0
    %1197 = vmatmul.mubr.f32.gmra.mxu0 %v991
    %v1198 = vpop.f32.mrf.mxu0
    %v1199 = vadd.f32 0.0, %v1198
    %v1200 = vpop.f32.mrf.mxu0
    %1201 = vmatprep.mubr.f32.mxu0 0.0
    %1202 = vmatmul.mubr.f32.gmra.mxu0 %v992
    %v1203 = vpop.f32.mrf.mxu0
    %v1204 = vadd.f32 0.0, %v1203
    %v1205 = vpop.f32.mrf.mxu0
    %1206 = vmatprep.mubr.f32.mxu0 0.0
    %1207 = vmatmul.mubr.f32.gmra.mxu0 %v993
    %v1208 = vpop.f32.mrf.mxu0
    %v1209 = vadd.f32 0.0, %v1208
    %v1210 = vpop.f32.mrf.mxu0
    %1211 = vdwg.mxu0
    %v1212 = vld [vmem:[#allocation2 + $0x4] sm:$0xff]
    %v1213 = vld [vmem:[#allocation2 + $0xc] sm:$0xff]
    %v1214 = vld [vmem:[#allocation2 + $0x14] sm:$0xff]
    %v1215 = vld [vmem:[#allocation2 + $0x1c] sm:$0xf]
    %v1216 = vadd.f32 %v1212, %v1194
    %v1217 = vadd.f32 %v1213, %v1199
    %v1218 = vadd.f32 %v1214, %v1204
    %v1219 = vadd.f32 %v1215, %v1209
    %1220 = vst [vmem:[#allocation2 + $0x4] sm:$0xff] %v1216
    %1221 = vst [vmem:[#allocation2 + $0xc] sm:$0xff] %v1217
    %1222 = vst [vmem:[#allocation2 + $0x14] sm:$0xff] %v1218
    %1223 = vst [vmem:[#allocation2 + $0x1c] sm:$0xf] %v1219
    %v1224 = vld [vmem:[#allocation2 + $0x18] sm:$0xff]
    %v1225 = vmax.f32 %v1224, 0.0
    %v1226 = vld [vmem:[#allocation14] sm:$0xff]
    %v1227 = vld [vmem:[#allocation14 + $0x8] sm:$0xff]
    %v1228 = vld [vmem:[#allocation14 + $0x10] sm:$0xff]
    %v1229 = vld [vmem:[#allocation14 + $0x18] sm:$0xff]
    %v1230 = vld [vmem:[#allocation14 + $0x20] sm:$0xff]
    %v1231 = vld [vmem:[#allocation14 + $0x28] sm:$0xff]
    %v1232 = vld [vmem:[#allocation14 + $0x30] sm:$0xff]
    %v1233 = vld [vmem:[#allocation14 + $0x38] sm:$0xff]
    %v1234 = vld [vmem:[#allocation14 + $0x40] sm:$0xff]
    %v1235 = vld [vmem:[#allocation14 + $0x48] sm:$0xff]
    %v1236 = vld [vmem:[#allocation14 + $0x50] sm:$0xff]
    %v1237 = vld [vmem:[#allocation14 + $0x58] sm:$0xff]
    %v1238 = vld [vmem:[#allocation14 + $0x60] sm:$0xff]
    %v1239 = vld [vmem:[#allocation14 + $0x68] sm:$0xff]
    %v1240 = vld [vmem:[#allocation14 + $0x70] sm:$0xff]
    %v1241 = vld [vmem:[#allocation14 + $0x78] sm:$0xff]
    %v1242 = vld [vmem:[%s12] sm:$0x1]
    %v1244 = vlaneseq
    %v1245 = vshrl.u32 %v1244, 7
    %v1246 = vsub.s32 0, %v1245
    %v1247 = vrot.slane %v1242, %v1246
    %1249 = vmatprep.subr.mxu0 0.0
    %1250 = vmatpush1.msra.mxu0 %v1241
    %1251 = vmatprep.subr.mxu0 0.0
    %1252 = vmatpush1.msra.mxu0 %v1240
    %1253 = vmatprep.subr.mxu0 0.0
    %1254 = vmatpush1.msra.mxu0 %v1239
    %1255 = vmatprep.subr.mxu0 0.0
    %1256 = vmatpush1.msra.mxu0 %v1238
    %1257 = vmatprep.subr.mxu0 0.0
    %1258 = vmatpush1.msra.mxu0 %v1237
    %1259 = vmatprep.subr.mxu0 0.0
    %1260 = vmatpush1.msra.mxu0 %v1236
    %1261 = vmatprep.subr.mxu0 0.0
    %1262 = vmatpush1.msra.mxu0 %v1235
    %1263 = vmatprep.subr.mxu0 0.0
    %1264 = vmatpush1.msra.mxu0 %v1234
    %1265 = vmatprep.subr.mxu0 0.0
    %1266 = vmatpush1.msra.mxu0 %v1233
    %1267 = vmatprep.subr.mxu0 0.0
    %1268 = vmatpush1.msra.mxu0 %v1232
    %1269 = vmatprep.subr.mxu0 0.0
    %1270 = vmatpush1.msra.mxu0 %v1231
    %1271 = vmatprep.subr.mxu0 0.0
    %1272 = vmatpush1.msra.mxu0 %v1230
    %1273 = vmatprep.subr.mxu0 0.0
    %1274 = vmatpush1.msra.mxu0 %v1229
    %1275 = vmatprep.subr.mxu0 0.0
    %1276 = vmatpush1.msra.mxu0 %v1228
    %1277 = vmatprep.subr.mxu0 0.0
    %1278 = vmatpush1.msra.mxu0 %v1227
    %1279 = vmatprep.subr.mxu0 0.0
    %1280 = vmatpush1.msra.mxu0 %v1226
    %1281 = vmatprep.subr.mxu0 0.0
    %1282 = vmatpush2.msra.mxu0 0.0
    %1283 = vmatprep.subr.mxu0 0.0
    %1284 = vmatpush2.msra.mxu0 0.0
    %1285 = vmatprep.subr.mxu0 0.0
    %1286 = vmatpush2.msra.mxu0 0.0
    %1287 = vmatprep.subr.mxu0 0.0
    %1288 = vmatpush2.msra.mxu0 0.0
    %1289 = vmatprep.subr.mxu0 0.0
    %1290 = vmatpush2.msra.mxu0 0.0
    %1291 = vmatprep.subr.mxu0 0.0
    %1292 = vmatpush2.msra.mxu0 0.0
    %1293 = vmatprep.subr.mxu0 0.0
    %1294 = vmatpush2.msra.mxu0 0.0
    %1295 = vmatprep.subr.mxu0 0.0
    %1296 = vmatpush2.msra.mxu0 0.0
    %1297 = vmatprep.subr.mxu0 0.0
    %1298 = vmatpush2.msra.mxu0 0.0
    %1299 = vmatprep.subr.mxu0 0.0
    %1300 = vmatpush2.msra.mxu0 0.0
    %1301 = vmatprep.subr.mxu0 0.0
    %1302 = vmatpush2.msra.mxu0 0.0
    %1303 = vmatprep.subr.mxu0 0.0
    %1304 = vmatpush2.msra.mxu0 0.0
    %1305 = vmatprep.subr.mxu0 0.0
    %1306 = vmatpush2.msra.mxu0 0.0
    %1307 = vmatprep.subr.mxu0 0.0
    %1308 = vmatpush2.msra.mxu0 0.0
    %1309 = vmatprep.subr.mxu0 0.0
    %1310 = vmatpush2.msra.mxu0 0.0
    %1311 = vmatprep.subr.mxu0 0.0
    %1312 = vmatpush2.msra.mxu0 0.0
    %1313 = vmatprep.mubr.f32.mxu0 0.0
    %1314 = vmatmul.mubr.f32.gmra.mxu0 %v752
    %v1315 = vpop.f32.mrf.mxu0
    %v1316 = vpop.f32.mrf.mxu0
    %1317 = vmatprep.mubr.f32.mxu0 0.0
    %1318 = vmatmul.mubr.f32.gmra.mxu0 %v753
    %v1319 = vpop.f32.mrf.mxu0
    %v1320 = vpop.f32.mrf.mxu0
    %1321 = vmatprep.mubr.f32.mxu0 0.0
    %1322 = vmatmul.mubr.f32.gmra.mxu0 %v754
    %v1323 = vpop.f32.mrf.mxu0
    %v1324 = vpop.f32.mrf.mxu0
    %1325 = vmatprep.mubr.f32.mxu0 0.0
    %1326 = vmatmul.mubr.f32.gmra.mxu0 %v755
    %v1327 = vpop.f32.mrf.mxu0
    %v1328 = vadd.f32 %v1247, %v1327
    %v1329 = vpop.f32.mrf.mxu0
    %1330 = vdwg.mxu0
    %v1331 = vadd.f32 %v1225, %v1328
    %v1332 = vmax.f32 %v1331, 0.0
    %v1333 = vld [vmem:[#allocation15] sm:$0xff]
    %v1334 = vld [vmem:[#allocation15 + $0x8] sm:$0xff]
    %v1335 = vld [vmem:[#allocation15 + $0x10] sm:$0xff]
    %v1336 = vld [vmem:[#allocation15 + $0x18] sm:$0xff]
    %v1337 = vld [vmem:[#allocation15 + $0x20] sm:$0xff]
    %v1338 = vld [vmem:[#allocation15 + $0x28] sm:$0xff]
    %v1339 = vld [vmem:[#allocation15 + $0x30] sm:$0xff]
    %v1340 = vld [vmem:[#allocation15 + $0x38] sm:$0xff]
    %v1341 = vld [vmem:[#allocation15 + $0x40] sm:$0xff]
    %v1342 = vld [vmem:[#allocation15 + $0x48] sm:$0xff]
    %v1343 = vld [vmem:[#allocation15 + $0x50] sm:$0xff]
    %v1344 = vld [vmem:[#allocation15 + $0x58] sm:$0xff]
    %v1345 = vld [vmem:[#allocation15 + $0x60] sm:$0xff]
    %v1346 = vld [vmem:[#allocation15 + $0x68] sm:$0xff]
    %v1347 = vld [vmem:[#allocation15 + $0x70] sm:$0xff]
    %v1348 = vld [vmem:[#allocation15 + $0x78] sm:$0xff]
    %v1349 = vld [vmem:[%s14] sm:$0x1]
    %v1351 = vlaneseq
    %v1352 = vshrl.u32 %v1351, 7
    %v1353 = vsub.s32 0, %v1352
    %v1354 = vrot.slane %v1349, %v1353
    %v1357 = vrot.slane %v1332, 6
    %1359 = vmatprep.subr.mxu0 0.0
    %1360 = vmatpush1.msra.mxu0 %v1348
    %1361 = vmatprep.subr.mxu0 0.0
    %1362 = vmatpush1.msra.mxu0 %v1347
    %1363 = vmatprep.subr.mxu0 0.0
    %1364 = vmatpush1.msra.mxu0 %v1346
    %1365 = vmatprep.subr.mxu0 0.0
    %1366 = vmatpush1.msra.mxu0 %v1345
    %1367 = vmatprep.subr.mxu0 0.0
    %1368 = vmatpush1.msra.mxu0 %v1344
    %1369 = vmatprep.subr.mxu0 0.0
    %1370 = vmatpush1.msra.mxu0 %v1343
    %1371 = vmatprep.subr.mxu0 0.0
    %1372 = vmatpush1.msra.mxu0 %v1342
    %1373 = vmatprep.subr.mxu0 0.0
    %1374 = vmatpush1.msra.mxu0 %v1341
    %1375 = vmatprep.subr.mxu0 0.0
    %1376 = vmatpush1.msra.mxu0 %v1340
    %1377 = vmatprep.subr.mxu0 0.0
    %1378 = vmatpush1.msra.mxu0 %v1339
    %1379 = vmatprep.subr.mxu0 0.0
    %1380 = vmatpush1.msra.mxu0 %v1338
    %1381 = vmatprep.subr.mxu0 0.0
    %1382 = vmatpush1.msra.mxu0 %v1337
    %1383 = vmatprep.subr.mxu0 0.0
    %1384 = vmatpush1.msra.mxu0 %v1336
    %1385 = vmatprep.subr.mxu0 0.0
    %1386 = vmatpush1.msra.mxu0 %v1335
    %1387 = vmatprep.subr.mxu0 0.0
    %1388 = vmatpush1.msra.mxu0 %v1334
    %1389 = vmatprep.subr.mxu0 0.0
    %1390 = vmatpush1.msra.mxu0 %v1333
    %1391 = vmatprep.subr.mxu0 0.0
    %1392 = vmatpush2.msra.mxu0 0.0
    %1393 = vmatprep.subr.mxu0 0.0
    %1394 = vmatpush2.msra.mxu0 0.0
    %1395 = vmatprep.subr.mxu0 0.0
    %1396 = vmatpush2.msra.mxu0 0.0
    %1397 = vmatprep.subr.mxu0 0.0
    %1398 = vmatpush2.msra.mxu0 0.0
    %1399 = vmatprep.subr.mxu0 0.0
    %1400 = vmatpush2.msra.mxu0 0.0
    %1401 = vmatprep.subr.mxu0 0.0
    %1402 = vmatpush2.msra.mxu0 0.0
    %1403 = vmatprep.subr.mxu0 0.0
    %1404 = vmatpush2.msra.mxu0 0.0
    %1405 = vmatprep.subr.mxu0 0.0
    %1406 = vmatpush2.msra.mxu0 0.0
    %1407 = vmatprep.subr.mxu0 0.0
    %1408 = vmatpush2.msra.mxu0 0.0
    %1409 = vmatprep.subr.mxu0 0.0
    %1410 = vmatpush2.msra.mxu0 0.0
    %1411 = vmatprep.subr.mxu0 0.0
    %1412 = vmatpush2.msra.mxu0 0.0
    %1413 = vmatprep.subr.mxu0 0.0
    %1414 = vmatpush2.msra.mxu0 0.0
    %1415 = vmatprep.subr.mxu0 0.0
    %1416 = vmatpush2.msra.mxu0 0.0
    %1417 = vmatprep.subr.mxu0 0.0
    %1418 = vmatpush2.msra.mxu0 0.0
    %1419 = vmatprep.subr.mxu0 0.0
    %1420 = vmatpush2.msra.mxu0 0.0
    %1421 = vmatprep.subr.mxu0 0.0
    %1422 = vmatpush2.msra.mxu0 0.0
    %1423 = vmatprep.mubr.f32.mxu0 0.0
    %1424 = vmatmul.mubr.f32.gmra.mxu0 %v1357
    %v1425 = vpop.f32.mrf.mxu0
    %v1426 = vadd.f32 %v1354, %v1425
    %v1427 = vpop.f32.mrf.mxu0
    %1428 = vdwg.mxu0
    %1429 = vst [vmem:[#allocation17] sm:$0x3] %v1426
    // Predicated region
    $region94: #{tpu_custom_call.1} parent=1 // pred_check
      _
    $region95: #{tpu_custom_call.1} parent=1 // pred_check_branch
      %1431 = sbr.rel (0) target = $region97
    $region96: #{tpu_custom_call.1} parent=1 // pred_region
      %s1433 = ssub.s32 32, 32
      %1434 = vsyncadd [#allocation5], %s1433
      %s1436 = sshll.u32 [#allocation17], 4
      %s1437 = int_to_ptr.vmem [resolvable:$true] %s1436
      %1439 = dma.vmem_to_hbm [thread:$0]  %s1437, 32, %s15, [#allocation5]
    $region97: #{tpu_custom_call.1} parent=1 // pred_fallthru
      _
    // Predicated region
    $region98: #{tpu_custom_call.1} parent=1 // pred_check
      _
    $region99: #{tpu_custom_call.1} parent=1 // pred_check_branch
      %1441 = sbr.rel (0) target = $region101
    $region100: #{tpu_custom_call.1} parent=1 // pred_region
      %1442 = dma.done [#allocation5], 32
    $region101: #{tpu_custom_call.1} parent=1 // pred_fallthru
      _
    %1443 = vsyncpa [#allocation4], 1
    %1444 = vsyncpa [#allocation7], 1
    %1445 = vsyncpa [#allocation10], 1
    %1446 = vsyncpa [#allocation13], 1
    %1447 = vsyncpa [#allocation16], 1
    %1448 = vsyncpa [#allocation5], 1

</llo_original>
